<compile_context>
chip_gen: v7x
topology: tpu7x:2x2x1
jax: 0.10.0
libtpu: 0.0.40
codegen_flags: <defaults>
</compile_context>

<pallas_src>
import jax
import jax.numpy as jnp
from jax import lax
from jax.experimental import pallas as pl
from jax.experimental.pallas import tpu as pltpu

OUT_ROWS = 8           # sublane-padded output rows: [mean0, mean1, std_sum, 0*5]
PALLAS_MIN_ROWS = 512  # below this, the fused XLA path beats pallas_call fixed cost


def _round_up(x, m):
    return ((x + m - 1) // m) * m


def ddpg_kernel(pos_ref, att_ref, w1p_ref, w1a_ref, b1_ref,
                w2_ref, b2_ref, w3t_ref, b3_ref, out_ref):
    # Layer 1: the torch concat is folded into a split matmul (f32 accumulation).
    h1 = (jnp.dot(pos_ref[...], w1p_ref[...], preferred_element_type=jnp.float32)
          + jnp.dot(att_ref[...], w1a_ref[...], preferred_element_type=jnp.float32)
          + b1_ref[...])
    h1 = jnp.where(h1 > 0, h1, 0.01 * h1)            # LeakyReLU(0.01), f32 on the VPU

    # Layer 2.
    h2 = jnp.dot(h1.astype(w2_ref.dtype), w2_ref[...],
                 preferred_element_type=jnp.float32) + b2_ref[...]
    h2 = jnp.where(h2 > 0, h2, 0.01 * h2)            # LeakyReLU, f32

    # Layer 3, computed transposed so the output tile is lane-dense:
    #   out_t[r, m] = sum_k w3_t[r, k] * h2[m, k]   (std-sum already folded into row 2)
    out_t = lax.dot_general(
        w3t_ref[...], h2.astype(w3t_ref.dtype),
        dimension_numbers=(((1,), (1,)), ((), ())),   # contract both dim-1 (q @ k.T form)
        preferred_element_type=jnp.float32) + b3_ref[...]            # (8, TM) f32

    # tanh only on the mean rows (0,1); row 2 (std_sum) and zero-pad rows pass through.
    row = lax.broadcasted_iota(jnp.int32, out_t.shape, 0)
    out_ref[...] = jnp.where(row < 2, jnp.tanh(out_t), out_t)


def ddpg_forward(attention_state, position_encoding, params,
                 compute_dtype=jnp.float32):
    """Pallas path.
       attention_state:   (n_agents, batch, hidden_dim) f32
       position_encoding: (n_agents, batch, time_dim)   f32
       returns (y_t: (n_agents, batch, 2), std_total: (n_agents, batch, 1))"""
    n_agents, batch, hidden_dim = attention_state.shape
    time_dim = position_encoding.shape[2]
    M = n_agents * batch

    w1, b1, w2, b2, w3, b3 = params
    d1 = w1.shape[1]          # 128
    d2 = w2.shape[1]          # 32
    assert w1.shape[0] == hidden_dim + time_dim

    # ---- trace-time weight preprocessing (free under jit) ----
    w1_pos = w1[:time_dim].astype(compute_dtype)                   # (T, 128)
    w1_att = w1[time_dim:].astype(compute_dtype)                   # (H, 128)
    w2_c = w2.astype(compute_dtype)                                # (128, 32)
    # Fold the std sum into the last linear, transpose it, pad to 8 sublane rows:
    #   rows of w3_t: [w3[:,0], w3[:,1], w3[:,2]+w3[:,3], 0, 0, 0, 0, 0]
    w3_eff_t = jnp.concatenate([w3[:, 0:2], w3[:, 2:3] + w3[:, 3:4]], axis=1).T   # (3, 32)
    b3_eff_t = jnp.concatenate([b3[:, 0:2], b3[:, 2:3] + b3[:, 3:4]], axis=1).T   # (3, 1)
    w3_t = jnp.zeros((OUT_ROWS, d2), jnp.float32).at[:3, :].set(w3_eff_t)
    w3_t = w3_t.astype(compute_dtype)                              # (8, 32)
    b3_col = jnp.zeros((OUT_ROWS, 1), jnp.float32).at[:3, :].set(b3_eff_t)  # (8, 1), f32
    # Biases stay f32 (added after the f32 accumulation).
    b1_f = b1.astype(jnp.float32)
    b2_f = b2.astype(jnp.float32)

    # ---- inputs: no concat, flatten each stream ----
    # (For the bf16 path, ideally the upstream producer already emits bf16; here the
    #  cast is a cheap standalone pass over a small input stream.)
    pos_flat = position_encoding.reshape(M, time_dim).astype(compute_dtype)
    att_flat = attention_state.reshape(M, hidden_dim).astype(compute_dtype)

    # ---- row tiling over M (M is the lane dim of the transposed output) ----
    TM = min(2048, max(512, _round_up(pl.cdiv(M, 2), 128)))
    M_pad = _round_up(M, TM)
    if M_pad != M:
        pad = M_pad - M
        pos_flat = jnp.pad(pos_flat, ((0, pad), (0, 0)))
        att_flat = jnp.pad(att_flat, ((0, pad), (0, 0)))
    grid = (M_pad // TM,)

    out_t = pl.pallas_call(
        ddpg_kernel,
        out_shape=jax.ShapeDtypeStruct((OUT_ROWS, M_pad), jnp.float32),
        grid=grid,
        in_specs=[
            pl.BlockSpec((TM, time_dim), lambda i: (i, 0)),      # pos rows
            pl.BlockSpec((TM, hidden_dim), lambda i: (i, 0)),    # att rows
            # Weights/biases: constant index_map -> fetched once, stay VMEM-resident.
            pl.BlockSpec((time_dim, d1), lambda i: (0, 0)),      # w1[:T]
            pl.BlockSpec((hidden_dim, d1), lambda i: (0, 0)),    # w1[T:]
            pl.BlockSpec((1, d1), lambda i: (0, 0)),             # b1
            pl.BlockSpec((d1, d2), lambda i: (0, 0)),            # w2
            pl.BlockSpec((1, d2), lambda i: (0, 0)),             # b2
            pl.BlockSpec((OUT_ROWS, d2), lambda i: (0, 0)),      # w3 (folded, transposed)
            pl.BlockSpec((OUT_ROWS, 1), lambda i: (0, 0)),       # b3 (folded, column)
        ],
        out_specs=pl.BlockSpec((OUT_ROWS, TM), lambda i: (0, i)),
        compiler_params=pltpu.CompilerParams(
            dimension_semantics=("parallel",)),
    )(pos_flat, att_flat, w1_pos, w1_att, b1_f, w2_c, b2_f, w3_t, b3_col)

    out_t = out_t[:, :M]                                   # drop row padding (lane dim)
    y_t = out_t[0:2, :].T.reshape(n_agents, batch, 2)
    std_total = out_t[2:3, :].T.reshape(n_agents, batch, 1)
    return y_t, std_total


def ddpg_forward_auto(attention_state, position_encoding, params,
                      compute_dtype=jnp.float32):
    """Dispatch: tiny problems (M below a few hundred rows) use the fused XLA path,
    where pallas_call fixed cost + padding would dominate; larger M uses Pallas."""
    M = attention_state.shape[0] * attention_state.shape[1]
    if M < PALLAS_MIN_ROWS:
        return _ref_forward(attention_state, position_encoding, params)
    return ddpg_forward(attention_state, position_encoding, params, compute_dtype)


def init_params(key, hidden_dim, time_dim):
    d_in = hidden_dim + time_dim
    ks = jax.random.split(key, 6)
    # Deterministic synthetic init (roughly PyTorch-Linear-like scaling).
    w1 = jax.random.normal(ks[0], (d_in, 128), jnp.float32) * (1.0 / jnp.sqrt(d_in))
    b1 = jax.random.normal(ks[1], (1, 128), jnp.float32) * 0.01
    w2 = jax.random.normal(ks[2], (128, 32), jnp.float32) * (1.0 / jnp.sqrt(128))
    b2 = jax.random.normal(ks[3], (1, 32), jnp.float32) * 0.01
    w3 = jax.random.normal(ks[4], (32, 4), jnp.float32) * (1.0 / jnp.sqrt(32))
    b3 = jax.random.normal(ks[5], (1, 4), jnp.float32) * 0.01
    return (w1, b1, w2, b2, w3, b3)


def _ref_forward(attention_state, position_encoding, params):
    """Plain-JAX reference mirroring the PyTorch forward (correctness check / tiny-M path)."""
    w1, b1, w2, b2, w3, b3 = params
    x = jnp.concatenate([position_encoding, attention_state], axis=2)
    h1 = x @ w1 + b1
    h1 = jnp.where(h1 > 0, h1, 0.01 * h1)
    h2 = h1 @ w2 + b2
    h2 = jnp.where(h2 > 0, h2, 0.01 * h2)
    out = h2 @ w3 + b3
    y_t = jnp.tanh(out[..., 0:2])
    std_total = jnp.sum(out[..., 2:4], axis=-1, keepdims=True)
    return y_t, std_total


if __name__ == "__main__":
    # Small shapes consistent with the module:
    #   nb_UAVs=2, action_dim=2, time_dim=8, hidden_dim=32, batch=8
    n_agents, batch, hidden_dim, time_dim = 2, 8, 32, 8

    key = jax.random.PRNGKey(0)
    k_att, k_pos, k_par, k_att2, k_pos2 = jax.random.split(key, 5)
    params = init_params(k_par, hidden_dim, time_dim)

    fwd = jax.jit(ddpg_forward, static_argnames=("compute_dtype",))

    # --- small demo shapes (module-consistent): Pallas kernel, f32, tight check ---
    attention_state = jax.random.normal(k_att, (n_agents, batch, hidden_dim), jnp.float32)
    position_encoding = jax.random.normal(k_pos, (n_agents, batch, time_dim), jnp.float32)
    y_t, std_total = fwd(attention_state, position_encoding, params)
    jax.block_until_ready((y_t, std_total))
    assert y_t.shape == (n_agents, batch, 2)
    assert std_total.shape == (n_agents, batch, 1)
    y_ref, s_ref = _ref_forward(attention_state, position_encoding, params)
    assert bool(jnp.allclose(y_t, y_ref, atol=1e-4, rtol=1e-4))
    assert bool(jnp.allclose(std_total, s_ref, atol=1e-4, rtol=1e-4))

    # --- larger M: multi-step parallel grid (TM=1024, grid=(2,) -> both v7x TCs), f32 ---
    A2, B2 = 4, 512                                    # M = 2048
    att_l = jax.random.normal(k_att2, (A2, B2, hidden_dim), jnp.float32)
    pos_l = jax.random.normal(k_pos2, (A2, B2, time_dim), jnp.float32)
    y_l, s_l = fwd(att_l, pos_l, params)
    jax.block_until_ready((y_l, s_l))
    y_lr, s_lr = _ref_forward(att_l, pos_l, params)
    assert bool(jnp.allclose(y_l, y_lr, atol=1e-3, rtol=1e-3))
    assert bool(jnp.allclose(s_l, s_lr, atol=1e-3, rtol=1e-3))

    # --- bf16 MXU-operand path (accumulation + elementwise stay f32): loose sanity check ---
    y_b, s_b = fwd(att_l, pos_l, params, compute_dtype=jnp.bfloat16)
    jax.block_until_ready((y_b, s_b))
    assert bool(jnp.allclose(y_b, y_lr, atol=1e-1, rtol=1e-1))
    assert bool(jnp.allclose(s_b, s_lr, atol=1e-1, rtol=1e-1))

    # --- tiny-M auto-dispatch falls back to the fused XLA path ---
    fwd_auto = jax.jit(ddpg_forward_auto, static_argnames=("compute_dtype",))
    y_a, s_a = fwd_auto(attention_state, position_encoding, params)
    jax.block_until_ready((y_a, s_a))
    assert bool(jnp.allclose(y_a, y_ref, atol=1e-4, rtol=1e-4))
    assert bool(jnp.allclose(s_a, s_ref, atol=1e-4, rtol=1e-4))

    # TODO(synk): time_encoding from __init__ is never used in forward, so it is omitted.
    print("KERNEL_OK")
</pallas_src>

<mosaic_0001>
module attributes {stable_mosaic.version = 11 : i64} {
  func.func @ddpg_kernel(%arg0: i32, %arg1: memref<512x8xf32, #tpu.memory_space<vmem>>, %arg2: memref<512x32xf32, #tpu.memory_space<vmem>>, %arg3: memref<8x128xf32, #tpu.memory_space<vmem>>, %arg4: memref<32x128xf32, #tpu.memory_space<vmem>>, %arg5: memref<1x128xf32, #tpu.memory_space<vmem>>, %arg6: memref<128x32xf32, #tpu.memory_space<vmem>>, %arg7: memref<1x32xf32, #tpu.memory_space<vmem>>, %arg8: memref<8x32xf32, #tpu.memory_space<vmem>>, %arg9: memref<8x1xf32, #tpu.memory_space<vmem>>, %arg10: memref<8x512xf32, #tpu.memory_space<vmem>>) attributes {dimension_semantics = [#tpu.dimension_semantics<parallel>], iteration_bounds = array<i64: 1>, scalar_prefetch = 0 : i64, scratch_operands = 0 : i64, tpu.core_type = #tpu.core_type<tc>, window_params = [{transform_indices = @transform_0, window_bounds = array<i64: 512, 8>}, {transform_indices = @transform_1, window_bounds = array<i64: 512, 32>}, {pipeline_mode = #tpu.pipeline_mode<synchronous>, transform_indices = @transform_2, window_bounds = array<i64: 8, 128>}, {pipeline_mode = #tpu.pipeline_mode<synchronous>, transform_indices = @transform_3, window_bounds = array<i64: 32, 128>}, {pipeline_mode = #tpu.pipeline_mode<synchronous>, transform_indices = @transform_4, window_bounds = array<i64: 1, 128>}, {pipeline_mode = #tpu.pipeline_mode<synchronous>, transform_indices = @transform_5, window_bounds = array<i64: 128, 32>}, {pipeline_mode = #tpu.pipeline_mode<synchronous>, transform_indices = @transform_6, window_bounds = array<i64: 1, 32>}, {pipeline_mode = #tpu.pipeline_mode<synchronous>, transform_indices = @transform_7, window_bounds = array<i64: 8, 32>}, {pipeline_mode = #tpu.pipeline_mode<synchronous>, transform_indices = @transform_8, window_bounds = array<i64: 8, 1>}, {transform_indices = @transform_9, window_bounds = array<i64: 8, 512>}]} {
    %c0 = arith.constant 0 : index
    %c0_0 = arith.constant 0 : index
    %0 = vector.load %arg1[%c0, %c0_0] : memref<512x8xf32, #tpu.memory_space<vmem>>, vector<512x8xf32>
    %c0_1 = arith.constant 0 : index
    %c0_2 = arith.constant 0 : index
    %1 = vector.load %arg3[%c0_1, %c0_2] : memref<8x128xf32, #tpu.memory_space<vmem>>, vector<8x128xf32>
    %cst = arith.constant dense<0.000000e+00> : vector<512x128xf32>
    %2 = tpu.matmul %0, %1, %cst {dimension_numbers = #tpu.dot_dimension_numbers<[1], [0], [0], [1], [0, 0, 1, 1], [], []>} : vector<512x8xf32>, vector<8x128xf32>, vector<512x128xf32> -> vector<512x128xf32>
    %c0_3 = arith.constant 0 : index
    %c0_4 = arith.constant 0 : index
    %3 = vector.load %arg2[%c0_3, %c0_4] : memref<512x32xf32, #tpu.memory_space<vmem>>, vector<512x32xf32>
    %c0_5 = arith.constant 0 : index
    %c0_6 = arith.constant 0 : index
    %4 = vector.load %arg4[%c0_5, %c0_6] : memref<32x128xf32, #tpu.memory_space<vmem>>, vector<32x128xf32>
    %cst_7 = arith.constant dense<0.000000e+00> : vector<512x128xf32>
    %5 = tpu.matmul %3, %4, %cst_7 {dimension_numbers = #tpu.dot_dimension_numbers<[1], [0], [0], [1], [0, 0, 1, 1], [], []>} : vector<512x32xf32>, vector<32x128xf32>, vector<512x128xf32> -> vector<512x128xf32>
    %6 = arith.addf %2, %5 : vector<512x128xf32>
    %c0_8 = arith.constant 0 : index
    %c0_9 = arith.constant 0 : index
    %7 = vector.load %arg5[%c0_8, %c0_9] : memref<1x128xf32, #tpu.memory_space<vmem>>, vector<1x128xf32>
    %8 = vector.broadcast %7 : vector<1x128xf32> to vector<512x128xf32>
    %9 = arith.addf %6, %8 : vector<512x128xf32>
    %cst_10 = arith.constant 0.000000e+00 : f32
    %10 = vector.broadcast %cst_10 : f32 to vector<512x128xf32>
    %11 = arith.cmpf ogt, %9, %10 : vector<512x128xf32>
    %cst_11 = arith.constant 0.00999999977 : f32
    %12 = vector.broadcast %cst_11 : f32 to vector<512x128xf32>
    %13 = arith.mulf %12, %9 : vector<512x128xf32>
    %14 = arith.select %11, %9, %13 : vector<512x128xi1>, vector<512x128xf32>
    %c0_12 = arith.constant 0 : index
    %c0_13 = arith.constant 0 : index
    %15 = vector.load %arg6[%c0_12, %c0_13] : memref<128x32xf32, #tpu.memory_space<vmem>>, vector<128x32xf32>
    %cst_14 = arith.constant dense<0.000000e+00> : vector<512x32xf32>
    %16 = tpu.matmul %14, %15, %cst_14 {dimension_numbers = #tpu.dot_dimension_numbers<[1], [0], [0], [1], [0, 0, 1, 1], [], []>} : vector<512x128xf32>, vector<128x32xf32>, vector<512x32xf32> -> vector<512x32xf32>
    %c0_15 = arith.constant 0 : index
    %c0_16 = arith.constant 0 : index
    %17 = vector.load %arg7[%c0_15, %c0_16] : memref<1x32xf32, #tpu.memory_space<vmem>>, vector<1x32xf32>
    %18 = vector.broadcast %17 : vector<1x32xf32> to vector<512x32xf32>
    %19 = arith.addf %16, %18 : vector<512x32xf32>
    %cst_17 = arith.constant 0.000000e+00 : f32
    %20 = vector.broadcast %cst_17 : f32 to vector<512x32xf32>
    %21 = arith.cmpf ogt, %19, %20 : vector<512x32xf32>
    %cst_18 = arith.constant 0.00999999977 : f32
    %22 = vector.broadcast %cst_18 : f32 to vector<512x32xf32>
    %23 = arith.mulf %22, %19 : vector<512x32xf32>
    %24 = arith.select %21, %19, %23 : vector<512x32xi1>, vector<512x32xf32>
    %c0_19 = arith.constant 0 : index
    %c0_20 = arith.constant 0 : index
    %25 = vector.load %arg8[%c0_19, %c0_20] : memref<8x32xf32, #tpu.memory_space<vmem>>, vector<8x32xf32>
    %cst_21 = arith.constant dense<0.000000e+00> : vector<8x512xf32>
    %26 = tpu.matmul %25, %24, %cst_21 {dimension_numbers = #tpu.dot_dimension_numbers<[1], [1], [0], [0], [0, 0, 1, 0], [], []>} : vector<8x32xf32>, vector<512x32xf32>, vector<8x512xf32> -> vector<8x512xf32>
    %c0_22 = arith.constant 0 : index
    %c0_23 = arith.constant 0 : index
    %27 = vector.load %arg9[%c0_22, %c0_23] : memref<8x1xf32, #tpu.memory_space<vmem>>, vector<8x1xf32>
    %28 = vector.broadcast %27 : vector<8x1xf32> to vector<8x512xf32>
    %29 = arith.addf %26, %28 : vector<8x512xf32>
    %30 = tpu.iota {dimensions = array<i32: 0>} : vector<8x512xi32>
    %c2_i32 = arith.constant 2 : i32
    %31 = vector.broadcast %c2_i32 : i32 to vector<8x512xi32>
    %32 = arith.cmpi slt, %30, %31 : vector<8x512xi32>
    %33 = math.tanh %29 : vector<8x512xf32>
    %34 = arith.select %32, %33, %29 : vector<8x512xi1>, vector<8x512xf32>
    %c0_24 = arith.constant 0 : index
    %c0_25 = arith.constant 0 : index
    %35 = vector.load %arg10[%c0_24, %c0_25] : memref<8x512xf32, #tpu.memory_space<vmem>>, vector<8x512xf32>
    tpu.vector_store %arg10[%c0_24, %c0_25], %34 {strides = array<i32>} : memref<8x512xf32, #tpu.memory_space<vmem>>, vector<8x512xf32>,
    return
  }
  func.func @transform_0(%arg0: i32) -> (i32, i32) {
    %c0_i32 = arith.constant 0 : i32
    %c0_i32_0 = arith.constant 0 : i32
    return %arg0, %c0_i32 : i32, i32
  }
  func.func @transform_1(%arg0: i32) -> (i32, i32) {
    %c0_i32 = arith.constant 0 : i32
    %c0_i32_0 = arith.constant 0 : i32
    return %arg0, %c0_i32 : i32, i32
  }
  func.func @transform_2(%arg0: i32) -> (i32, i32) {
    %c0_i32 = arith.constant 0 : i32
    %c0_i32_0 = arith.constant 0 : i32
    %c0_i32_1 = arith.constant 0 : i32
    return %c0_i32, %c0_i32_0 : i32, i32
  }
  func.func @transform_3(%arg0: i32) -> (i32, i32) {
    %c0_i32 = arith.constant 0 : i32
    %c0_i32_0 = arith.constant 0 : i32
    %c0_i32_1 = arith.constant 0 : i32
    return %c0_i32, %c0_i32_0 : i32, i32
  }
  func.func @transform_4(%arg0: i32) -> (i32, i32) {
    %c0_i32 = arith.constant 0 : i32
    %c0_i32_0 = arith.constant 0 : i32
    %c0_i32_1 = arith.constant 0 : i32
    return %c0_i32, %c0_i32_0 : i32, i32
  }
  func.func @transform_5(%arg0: i32) -> (i32, i32) {
    %c0_i32 = arith.constant 0 : i32
    %c0_i32_0 = arith.constant 0 : i32
    %c0_i32_1 = arith.constant 0 : i32
    return %c0_i32, %c0_i32_0 : i32, i32
  }
  func.func @transform_6(%arg0: i32) -> (i32, i32) {
    %c0_i32 = arith.constant 0 : i32
    %c0_i32_0 = arith.constant 0 : i32
    %c0_i32_1 = arith.constant 0 : i32
    return %c0_i32, %c0_i32_0 : i32, i32
  }
  func.func @transform_7(%arg0: i32) -> (i32, i32) {
    %c0_i32 = arith.constant 0 : i32
    %c0_i32_0 = arith.constant 0 : i32
    %c0_i32_1 = arith.constant 0 : i32
    return %c0_i32, %c0_i32_0 : i32, i32
  }
  func.func @transform_8(%arg0: i32) -> (i32, i32) {
    %c0_i32 = arith.constant 0 : i32
    %c0_i32_0 = arith.constant 0 : i32
    %c0_i32_1 = arith.constant 0 : i32
    return %c0_i32, %c0_i32_0 : i32, i32
  }
  func.func @transform_9(%arg0: i32) -> (i32, i32) {
    %c0_i32 = arith.constant 0 : i32
    %c0_i32_0 = arith.constant 0 : i32
    return %c0_i32, %arg0 : i32, i32
  }
}

</mosaic_0001>

<llo_original>
// kernel: ddpg_forward.1
$region0: #{ddpg_forward.1}
  #allocation0 [shape = 'u32[]', space=smem, size = 0x4, offset = 0x4, fixed_abs, tag = 'smem constant byte address 0x4 - core index']
  #allocation1 [shape = 'u32[144,128]{1,0:T(1,128)}', space=vmem, size = 0x12000, scoped, tag = 'internal scratch']
  %s0 = inlined_call_operand.vmem [shape: f32[512,8], index: 0, kind: input, shape index: {}]
  %s1 = inlined_call_operand.vmem [shape: f32[512,32], index: 1, kind: input, shape index: {}]
  %s2 = inlined_call_operand.vmem [shape: f32[8,128], index: 2, kind: input, shape index: {}]
  %s3 = inlined_call_operand.vmem [shape: f32[32,128], index: 3, kind: input, shape index: {}]
  %s4 = inlined_call_operand.vmem [shape: f32[1,128], index: 4, kind: input, shape index: {}]
  %s5 = inlined_call_operand.vmem [shape: f32[128,32], index: 5, kind: input, shape index: {}]
  %s6 = inlined_call_operand.vmem [shape: f32[1,32], index: 6, kind: input, shape index: {}]
  %s7 = inlined_call_operand.vmem [shape: f32[8,32], index: 7, kind: input, shape index: {}]
  %s8 = inlined_call_operand.vmem [shape: f32[8,1], index: 8, kind: input, shape index: {}]
  %s9 = inlined_call_operand.vmem [shape: f32[8,512], index: 9, kind: output, shape index: {}]
  %s10 = sld [smem:[#allocation0]]
  $region46: #{ddpg_forward.1} parent=0
    _
  %s12 = ssub.s32 1, %s10
  %s13 = scalar_select 0, %s12, %s10
  // Predicated region
  $region2: #{ddpg_forward.1} parent=0 // pred_check
    _
  $region3: #{ddpg_forward.1} parent=0 // pred_check_branch
    %15 = sbr.rel (0) target = $region5
  $region4: #{ddpg_forward.1} parent=0 // pred_region
    _
  $region5: #{ddpg_forward.1} parent=0 // pred_fallthru
    _
  // Predicated region
  $region6: #{ddpg_forward.1} parent=0 // pred_check
    _
  $region7: #{ddpg_forward.1} parent=0 // pred_check_branch
    %17 = sbr.rel (0) target = $region9
  $region8: #{ddpg_forward.1} parent=0 // pred_region
    _
  $region9: #{ddpg_forward.1} parent=0 // pred_fallthru
    _
  // Predicated region
  $region10: #{ddpg_forward.1} parent=0 // pred_check
    _
  $region11: #{ddpg_forward.1} parent=0 // pred_check_branch
    %19 = sbr.rel (0) target = $region13
  $region12: #{ddpg_forward.1} parent=0 // pred_region
    _
  $region13: #{ddpg_forward.1} parent=0 // pred_fallthru
    _
  // Predicated region
  $region14: #{ddpg_forward.1} parent=0 // pred_check
    _
  $region15: #{ddpg_forward.1} parent=0 // pred_check_branch
    %21 = sbr.rel (0) target = $region17
  $region16: #{ddpg_forward.1} parent=0 // pred_region
    _
  $region17: #{ddpg_forward.1} parent=0 // pred_fallthru
    _
  // Predicated region
  $region18: #{ddpg_forward.1} parent=0 // pred_check
    _
  $region19: #{ddpg_forward.1} parent=0 // pred_check_branch
    %23 = sbr.rel (0) target = $region21
  $region20: #{ddpg_forward.1} parent=0 // pred_region
    _
  $region21: #{ddpg_forward.1} parent=0 // pred_fallthru
    _
  // Predicated region
  $region22: #{ddpg_forward.1} parent=0 // pred_check
    _
  $region23: #{ddpg_forward.1} parent=0 // pred_check_branch
    %25 = sbr.rel (0) target = $region25
  $region24: #{ddpg_forward.1} parent=0 // pred_region
    _
  $region25: #{ddpg_forward.1} parent=0 // pred_fallthru
    _
  // Predicated region
  $region26: #{ddpg_forward.1} parent=0 // pred_check
    _
  $region27: #{ddpg_forward.1} parent=0 // pred_check_branch
    %27 = sbr.rel (0) target = $region29
  $region28: #{ddpg_forward.1} parent=0 // pred_region
    _
  $region29: #{ddpg_forward.1} parent=0 // pred_fallthru
    _
  // Predicated region
  $region30: #{ddpg_forward.1} parent=0 // pred_check
    _
  $region31: #{ddpg_forward.1} parent=0 // pred_check_branch
    %29 = sbr.rel (0) target = $region33
  $region32: #{ddpg_forward.1} parent=0 // pred_region
    _
  $region33: #{ddpg_forward.1} parent=0 // pred_fallthru
    _
  // Predicated region
  $region34: #{ddpg_forward.1} parent=0 // pred_check
    _
  $region35: #{ddpg_forward.1} parent=0 // pred_check_branch
    %31 = sbr.rel (0) target = $region37
  $region36: #{ddpg_forward.1} parent=0 // pred_region
    _
  $region37: #{ddpg_forward.1} parent=0 // pred_fallthru
    _
  %v32 = vld [vmem:[%s0] sm:$0xff]
  %v33 = vld [vmem:[%s0 + $0x8] sm:$0xff]
  %v34 = vld [vmem:[%s0 + $0x10] sm:$0xff]
  %v35 = vld [vmem:[%s0 + $0x18] sm:$0xff]
  %v36 = vld [vmem:[%s0 + $0x20] sm:$0xff]
  %v37 = vld [vmem:[%s0 + $0x28] sm:$0xff]
  %v38 = vld [vmem:[%s0 + $0x30] sm:$0xff]
  %v39 = vld [vmem:[%s0 + $0x38] sm:$0xff]
  %v40 = vld [vmem:[%s0 + $0x40] sm:$0xff]
  %v41 = vld [vmem:[%s0 + $0x48] sm:$0xff]
  %v42 = vld [vmem:[%s0 + $0x50] sm:$0xff]
  %v43 = vld [vmem:[%s0 + $0x58] sm:$0xff]
  %v44 = vld [vmem:[%s0 + $0x60] sm:$0xff]
  %v45 = vld [vmem:[%s0 + $0x68] sm:$0xff]
  %v46 = vld [vmem:[%s0 + $0x70] sm:$0xff]
  %v47 = vld [vmem:[%s0 + $0x78] sm:$0xff]
  %v48 = vld [vmem:[%s0 + $0x80] sm:$0xff]
  %v49 = vld [vmem:[%s0 + $0x88] sm:$0xff]
  %v50 = vld [vmem:[%s0 + $0x90] sm:$0xff]
  %v51 = vld [vmem:[%s0 + $0x98] sm:$0xff]
  %v52 = vld [vmem:[%s0 + $0xa0] sm:$0xff]
  %v53 = vld [vmem:[%s0 + $0xa8] sm:$0xff]
  %v54 = vld [vmem:[%s0 + $0xb0] sm:$0xff]
  %v55 = vld [vmem:[%s0 + $0xb8] sm:$0xff]
  %v56 = vld [vmem:[%s0 + $0xc0] sm:$0xff]
  %v57 = vld [vmem:[%s0 + $0xc8] sm:$0xff]
  %v58 = vld [vmem:[%s0 + $0xd0] sm:$0xff]
  %v59 = vld [vmem:[%s0 + $0xd8] sm:$0xff]
  %v60 = vld [vmem:[%s0 + $0xe0] sm:$0xff]
  %v61 = vld [vmem:[%s0 + $0xe8] sm:$0xff]
  %v62 = vld [vmem:[%s0 + $0xf0] sm:$0xff]
  %v63 = vld [vmem:[%s0 + $0xf8] sm:$0xff]
  %v64 = vld [vmem:[%s0 + $0x100] sm:$0xff]
  %v65 = vld [vmem:[%s0 + $0x108] sm:$0xff]
  %v66 = vld [vmem:[%s0 + $0x110] sm:$0xff]
  %v67 = vld [vmem:[%s0 + $0x118] sm:$0xff]
  %v68 = vld [vmem:[%s0 + $0x120] sm:$0xff]
  %v69 = vld [vmem:[%s0 + $0x128] sm:$0xff]
  %v70 = vld [vmem:[%s0 + $0x130] sm:$0xff]
  %v71 = vld [vmem:[%s0 + $0x138] sm:$0xff]
  %v72 = vld [vmem:[%s0 + $0x140] sm:$0xff]
  %v73 = vld [vmem:[%s0 + $0x148] sm:$0xff]
  %v74 = vld [vmem:[%s0 + $0x150] sm:$0xff]
  %v75 = vld [vmem:[%s0 + $0x158] sm:$0xff]
  %v76 = vld [vmem:[%s0 + $0x160] sm:$0xff]
  %v77 = vld [vmem:[%s0 + $0x168] sm:$0xff]
  %v78 = vld [vmem:[%s0 + $0x170] sm:$0xff]
  %v79 = vld [vmem:[%s0 + $0x178] sm:$0xff]
  %v80 = vld [vmem:[%s0 + $0x180] sm:$0xff]
  %v81 = vld [vmem:[%s0 + $0x188] sm:$0xff]
  %v82 = vld [vmem:[%s0 + $0x190] sm:$0xff]
  %v83 = vld [vmem:[%s0 + $0x198] sm:$0xff]
  %v84 = vld [vmem:[%s0 + $0x1a0] sm:$0xff]
  %v85 = vld [vmem:[%s0 + $0x1a8] sm:$0xff]
  %v86 = vld [vmem:[%s0 + $0x1b0] sm:$0xff]
  %v87 = vld [vmem:[%s0 + $0x1b8] sm:$0xff]
  %v88 = vld [vmem:[%s0 + $0x1c0] sm:$0xff]
  %v89 = vld [vmem:[%s0 + $0x1c8] sm:$0xff]
  %v90 = vld [vmem:[%s0 + $0x1d0] sm:$0xff]
  %v91 = vld [vmem:[%s0 + $0x1d8] sm:$0xff]
  %v92 = vld [vmem:[%s0 + $0x1e0] sm:$0xff]
  %v93 = vld [vmem:[%s0 + $0x1e8] sm:$0xff]
  %v94 = vld [vmem:[%s0 + $0x1f0] sm:$0xff]
  %v95 = vld [vmem:[%s0 + $0x1f8] sm:$0xff]
  %v96 = vld [vmem:[%s2] sm:$0xff]
  %v97 = vld [vmem:[%s1] sm:$0xff]
  %v98 = vld [vmem:[%s1 + $0x8] sm:$0xff]
  %v99 = vld [vmem:[%s1 + $0x10] sm:$0xff]
  %v100 = vld [vmem:[%s1 + $0x18] sm:$0xff]
  %v101 = vld [vmem:[%s1 + $0x20] sm:$0xff]
  %v102 = vld [vmem:[%s1 + $0x28] sm:$0xff]
  %v103 = vld [vmem:[%s1 + $0x30] sm:$0xff]
  %v104 = vld [vmem:[%s1 + $0x38] sm:$0xff]
  %v105 = vld [vmem:[%s1 + $0x40] sm:$0xff]
  %v106 = vld [vmem:[%s1 + $0x48] sm:$0xff]
  %v107 = vld [vmem:[%s1 + $0x50] sm:$0xff]
  %v108 = vld [vmem:[%s1 + $0x58] sm:$0xff]
  %v109 = vld [vmem:[%s1 + $0x60] sm:$0xff]
  %v110 = vld [vmem:[%s1 + $0x68] sm:$0xff]
  %v111 = vld [vmem:[%s1 + $0x70] sm:$0xff]
  %v112 = vld [vmem:[%s1 + $0x78] sm:$0xff]
  %v113 = vld [vmem:[%s1 + $0x80] sm:$0xff]
  %v114 = vld [vmem:[%s1 + $0x88] sm:$0xff]
  %v115 = vld [vmem:[%s1 + $0x90] sm:$0xff]
  %v116 = vld [vmem:[%s1 + $0x98] sm:$0xff]
  %v117 = vld [vmem:[%s1 + $0xa0] sm:$0xff]
  %v118 = vld [vmem:[%s1 + $0xa8] sm:$0xff]
  %v119 = vld [vmem:[%s1 + $0xb0] sm:$0xff]
  %v120 = vld [vmem:[%s1 + $0xb8] sm:$0xff]
  %v121 = vld [vmem:[%s1 + $0xc0] sm:$0xff]
  %v122 = vld [vmem:[%s1 + $0xc8] sm:$0xff]
  %v123 = vld [vmem:[%s1 + $0xd0] sm:$0xff]
  %v124 = vld [vmem:[%s1 + $0xd8] sm:$0xff]
  %v125 = vld [vmem:[%s1 + $0xe0] sm:$0xff]
  %v126 = vld [vmem:[%s1 + $0xe8] sm:$0xff]
  %v127 = vld [vmem:[%s1 + $0xf0] sm:$0xff]
  %v128 = vld [vmem:[%s1 + $0xf8] sm:$0xff]
  %v129 = vld [vmem:[%s1 + $0x100] sm:$0xff]
  %v130 = vld [vmem:[%s1 + $0x108] sm:$0xff]
  %v131 = vld [vmem:[%s1 + $0x110] sm:$0xff]
  %v132 = vld [vmem:[%s1 + $0x118] sm:$0xff]
  %v133 = vld [vmem:[%s1 + $0x120] sm:$0xff]
  %v134 = vld [vmem:[%s1 + $0x128] sm:$0xff]
  %v135 = vld [vmem:[%s1 + $0x130] sm:$0xff]
  %v136 = vld [vmem:[%s1 + $0x138] sm:$0xff]
  %v137 = vld [vmem:[%s1 + $0x140] sm:$0xff]
  %v138 = vld [vmem:[%s1 + $0x148] sm:$0xff]
  %v139 = vld [vmem:[%s1 + $0x150] sm:$0xff]
  %v140 = vld [vmem:[%s1 + $0x158] sm:$0xff]
  %v141 = vld [vmem:[%s1 + $0x160] sm:$0xff]
  %v142 = vld [vmem:[%s1 + $0x168] sm:$0xff]
  %v143 = vld [vmem:[%s1 + $0x170] sm:$0xff]
  %v144 = vld [vmem:[%s1 + $0x178] sm:$0xff]
  %v145 = vld [vmem:[%s1 + $0x180] sm:$0xff]
  %v146 = vld [vmem:[%s1 + $0x188] sm:$0xff]
  %v147 = vld [vmem:[%s1 + $0x190] sm:$0xff]
  %v148 = vld [vmem:[%s1 + $0x198] sm:$0xff]
  %v149 = vld [vmem:[%s1 + $0x1a0] sm:$0xff]
  %v150 = vld [vmem:[%s1 + $0x1a8] sm:$0xff]
  %v151 = vld [vmem:[%s1 + $0x1b0] sm:$0xff]
  %v152 = vld [vmem:[%s1 + $0x1b8] sm:$0xff]
  %v153 = vld [vmem:[%s1 + $0x1c0] sm:$0xff]
  %v154 = vld [vmem:[%s1 + $0x1c8] sm:$0xff]
  %v155 = vld [vmem:[%s1 + $0x1d0] sm:$0xff]
  %v156 = vld [vmem:[%s1 + $0x1d8] sm:$0xff]
  %v157 = vld [vmem:[%s1 + $0x1e0] sm:$0xff]
  %v158 = vld [vmem:[%s1 + $0x1e8] sm:$0xff]
  %v159 = vld [vmem:[%s1 + $0x1f0] sm:$0xff]
  %v160 = vld [vmem:[%s1 + $0x1f8] sm:$0xff]
  %v161 = vld [vmem:[%s3] sm:$0xff]
  %v162 = vld [vmem:[%s3 + $0x8] sm:$0xff]
  %v163 = vld [vmem:[%s3 + $0x10] sm:$0xff]
  %v164 = vld [vmem:[%s3 + $0x18] sm:$0xff]
  %vm165 = vcmask 261120
  %v167 = vsel %vm165, %v97, 0
  %v170 = vsel %vm165, %v98, 0
  %v173 = vsel %vm165, %v99, 0
  %v176 = vsel %vm165, %v100, 0
  %v179 = vsel %vm165, %v101, 0
  %v182 = vsel %vm165, %v102, 0
  %v185 = vsel %vm165, %v103, 0
  %v188 = vsel %vm165, %v104, 0
  %v191 = vsel %vm165, %v105, 0
  %v194 = vsel %vm165, %v106, 0
  %v197 = vsel %vm165, %v107, 0
  %v200 = vsel %vm165, %v108, 0
  %v203 = vsel %vm165, %v109, 0
  %v206 = vsel %vm165, %v110, 0
  %v209 = vsel %vm165, %v111, 0
  %v212 = vsel %vm165, %v112, 0
  %v215 = vsel %vm165, %v113, 0
  %v218 = vsel %vm165, %v114, 0
  %v221 = vsel %vm165, %v115, 0
  %v224 = vsel %vm165, %v116, 0
  %v227 = vsel %vm165, %v117, 0
  %v230 = vsel %vm165, %v118, 0
  %v233 = vsel %vm165, %v119, 0
  %v236 = vsel %vm165, %v120, 0
  %v239 = vsel %vm165, %v121, 0
  %v242 = vsel %vm165, %v122, 0
  %v245 = vsel %vm165, %v123, 0
  %v248 = vsel %vm165, %v124, 0
  %v251 = vsel %vm165, %v125, 0
  %v254 = vsel %vm165, %v126, 0
  %v257 = vsel %vm165, %v127, 0
  %v260 = vsel %vm165, %v128, 0
  %v263 = vsel %vm165, %v129, 0
  %v266 = vsel %vm165, %v130, 0
  %v269 = vsel %vm165, %v131, 0
  %v272 = vsel %vm165, %v132, 0
  %v275 = vsel %vm165, %v133, 0
  %v278 = vsel %vm165, %v134, 0
  %v281 = vsel %vm165, %v135, 0
  %v284 = vsel %vm165, %v136, 0
  %v287 = vsel %vm165, %v137, 0
  %v290 = vsel %vm165, %v138, 0
  %v293 = vsel %vm165, %v139, 0
  %v296 = vsel %vm165, %v140, 0
  %v299 = vsel %vm165, %v141, 0
  %v302 = vsel %vm165, %v142, 0
  %v305 = vsel %vm165, %v143, 0
  %v308 = vsel %vm165, %v144, 0
  %v311 = vsel %vm165, %v145, 0
  %v314 = vsel %vm165, %v146, 0
  %v317 = vsel %vm165, %v147, 0
  %v320 = vsel %vm165, %v148, 0
  %v323 = vsel %vm165, %v149, 0
  %v326 = vsel %vm165, %v150, 0
  %v329 = vsel %vm165, %v151, 0
  %v332 = vsel %vm165, %v152, 0
  %v335 = vsel %vm165, %v153, 0
  %v338 = vsel %vm165, %v154, 0
  %v341 = vsel %vm165, %v155, 0
  %v344 = vsel %vm165, %v156, 0
  %v347 = vsel %vm165, %v157, 0
  %v350 = vsel %vm165, %v158, 0
  %v353 = vsel %vm165, %v159, 0
  %v356 = vsel %vm165, %v160, 0
  %358 = vmatprep.subr.mxu0 0.0
  %359 = vmatpush1.msra.mxu0 %v161
  %360 = vmatprep.subr.mxu0 0.0
  %361 = vmatpush1.msra.mxu0 %v162
  %362 = vmatprep.subr.mxu0 0.0
  %363 = vmatpush1.msra.mxu0 %v163
  %364 = vmatprep.subr.mxu0 0.0
  %365 = vmatpush1.msra.mxu0 %v164
  %366 = vmatprep.subr.mxu0 0.0
  %367 = vmatpush1.msra.mxu0 0.0
  %368 = vmatprep.subr.mxu0 0.0
  %369 = vmatpush1.msra.mxu0 0.0
  %370 = vmatprep.subr.mxu0 0.0
  %371 = vmatpush1.msra.mxu0 0.0
  %372 = vmatprep.subr.mxu0 0.0
  %373 = vmatpush1.msra.mxu0 0.0
  %374 = vmatprep.subr.mxu0 0.0
  %375 = vmatpush1.msra.mxu0 0.0
  %376 = vmatprep.subr.mxu0 0.0
  %377 = vmatpush1.msra.mxu0 0.0
  %378 = vmatprep.subr.mxu0 0.0
  %379 = vmatpush1.msra.mxu0 0.0
  %380 = vmatprep.subr.mxu0 0.0
  %381 = vmatpush1.msra.mxu0 0.0
  %382 = vmatprep.subr.mxu0 0.0
  %383 = vmatpush1.msra.mxu0 0.0
  %384 = vmatprep.subr.mxu0 0.0
  %385 = vmatpush1.msra.mxu0 0.0
  %386 = vmatprep.subr.mxu0 0.0
  %387 = vmatpush1.msra.mxu0 0.0
  %388 = vmatprep.subr.mxu0 0.0
  %389 = vmatpush1.msra.mxu0 0.0
  %390 = vmatprep.subr.mxu0 0.0
  %391 = vmatpush1.msra.mxu0 0.0
  %392 = vmatprep.subr.mxu0 0.0
  %393 = vmatpush1.msra.mxu0 0.0
  %394 = vmatprep.subr.mxu0 0.0
  %395 = vmatpush1.msra.mxu0 0.0
  %396 = vmatprep.subr.mxu0 0.0
  %397 = vmatpush1.msra.mxu0 0.0
  %398 = vmatprep.subr.mxu0 0.0
  %399 = vmatpush1.msra.mxu0 0.0
  %400 = vmatprep.subr.mxu0 0.0
  %401 = vmatpush1.msra.mxu0 0.0
  %402 = vmatprep.subr.mxu0 0.0
  %403 = vmatpush1.msra.mxu0 0.0
  %404 = vmatprep.subr.mxu0 0.0
  %405 = vmatpush1.msra.mxu0 0.0
  %406 = vmatprep.subr.mxu0 0.0
  %407 = vmatpush1.msra.mxu0 0.0
  %408 = vmatprep.subr.mxu0 0.0
  %409 = vmatpush1.msra.mxu0 0.0
  %410 = vmatprep.subr.mxu0 0.0
  %411 = vmatpush1.msra.mxu0 0.0
  %412 = vmatprep.subr.mxu0 0.0
  %413 = vmatpush1.msra.mxu0 0.0
  %414 = vmatprep.subr.mxu0 0.0
  %415 = vmatpush1.msra.mxu0 0.0
  %416 = vmatprep.subr.mxu0 0.0
  %417 = vmatpush1.msra.mxu0 0.0
  %418 = vmatprep.subr.mxu0 0.0
  %419 = vmatpush1.msra.mxu0 0.0
  %420 = vmatprep.subr.mxu0 0.0
  %421 = vmatpush1.msra.mxu0 0.0
  %422 = vmatprep.mubr.f32.mxu0 0.0
  %423 = vmatmul.mubr.f32.gmra.mrb[0].mxu0 %v167
  %v424 = vpop.f32.mrb[0].mxu0
  %v425 = vadd.f32 0.0, %v424
  %v426 = vpop.f32.mrb[0].mxu0
  %427 = vmatprep.mubr.f32.mxu0 0.0
  %428 = vmatmul.mubr.f32.gmra.mrb[0].mxu0 %v170
  %v429 = vpop.f32.mrb[0].mxu0
  %v430 = vadd.f32 0.0, %v429
  %v431 = vpop.f32.mrb[0].mxu0
  %432 = vmatprep.mubr.f32.mxu0 0.0
  %433 = vmatmul.mubr.f32.gmra.mrb[0].mxu0 %v173
  %v434 = vpop.f32.mrb[0].mxu0
  %v435 = vadd.f32 0.0, %v434
  %v436 = vpop.f32.mrb[0].mxu0
  %437 = vmatprep.mubr.f32.mxu0 0.0
  %438 = vmatmul.mubr.f32.gmra.mrb[0].mxu0 %v176
  %v439 = vpop.f32.mrb[0].mxu0
  %v440 = vadd.f32 0.0, %v439
  %v441 = vpop.f32.mrb[0].mxu0
  %442 = vmatprep.mubr.f32.mxu0 0.0
  %443 = vmatmul.mubr.f32.gmra.mrb[0].mxu0 %v179
  %v444 = vpop.f32.mrb[0].mxu0
  %v445 = vadd.f32 0.0, %v444
  %v446 = vpop.f32.mrb[0].mxu0
  %447 = vmatprep.mubr.f32.mxu0 0.0
  %448 = vmatmul.mubr.f32.gmra.mrb[0].mxu0 %v182
  %v449 = vpop.f32.mrb[0].mxu0
  %v450 = vadd.f32 0.0, %v449
  %v451 = vpop.f32.mrb[0].mxu0
  %452 = vmatprep.mubr.f32.mxu0 0.0
  %453 = vmatmul.mubr.f32.gmra.mrb[0].mxu0 %v185
  %v454 = vpop.f32.mrb[0].mxu0
  %v455 = vadd.f32 0.0, %v454
  %v456 = vpop.f32.mrb[0].mxu0
  %457 = vmatprep.mubr.f32.mxu0 0.0
  %458 = vmatmul.mubr.f32.gmra.mrb[0].mxu0 %v188
  %v459 = vpop.f32.mrb[0].mxu0
  %v460 = vadd.f32 0.0, %v459
  %v461 = vpop.f32.mrb[0].mxu0
  %462 = vmatprep.mubr.f32.mxu0 0.0
  %463 = vmatmul.mubr.f32.gmra.mrb[0].mxu0 %v191
  %v464 = vpop.f32.mrb[0].mxu0
  %v465 = vadd.f32 0.0, %v464
  %v466 = vpop.f32.mrb[0].mxu0
  %467 = vmatprep.mubr.f32.mxu0 0.0
  %468 = vmatmul.mubr.f32.gmra.mrb[0].mxu0 %v194
  %v469 = vpop.f32.mrb[0].mxu0
  %v470 = vadd.f32 0.0, %v469
  %v471 = vpop.f32.mrb[0].mxu0
  %472 = vmatprep.mubr.f32.mxu0 0.0
  %473 = vmatmul.mubr.f32.gmra.mrb[0].mxu0 %v197
  %v474 = vpop.f32.mrb[0].mxu0
  %v475 = vadd.f32 0.0, %v474
  %v476 = vpop.f32.mrb[0].mxu0
  %477 = vmatprep.mubr.f32.mxu0 0.0
  %478 = vmatmul.mubr.f32.gmra.mrb[0].mxu0 %v200
  %v479 = vpop.f32.mrb[0].mxu0
  %v480 = vadd.f32 0.0, %v479
  %v481 = vpop.f32.mrb[0].mxu0
  %482 = vmatprep.mubr.f32.mxu0 0.0
  %483 = vmatmul.mubr.f32.gmra.mrb[0].mxu0 %v203
  %v484 = vpop.f32.mrb[0].mxu0
  %v485 = vadd.f32 0.0, %v484
  %v486 = vpop.f32.mrb[0].mxu0
  %487 = vmatprep.mubr.f32.mxu0 0.0
  %488 = vmatmul.mubr.f32.gmra.mrb[0].mxu0 %v206
  %v489 = vpop.f32.mrb[0].mxu0
  %v490 = vadd.f32 0.0, %v489
  %v491 = vpop.f32.mrb[0].mxu0
  %492 = vmatprep.mubr.f32.mxu0 0.0
  %493 = vmatmul.mubr.f32.gmra.mrb[0].mxu0 %v209
  %v494 = vpop.f32.mrb[0].mxu0
  %v495 = vadd.f32 0.0, %v494
  %v496 = vpop.f32.mrb[0].mxu0
  %497 = vmatprep.mubr.f32.mxu0 0.0
  %498 = vmatmul.mubr.f32.gmra.mrb[0].mxu0 %v212
  %v499 = vpop.f32.mrb[0].mxu0
  %v500 = vadd.f32 0.0, %v499
  %v501 = vpop.f32.mrb[0].mxu0
  %502 = vmatprep.mubr.f32.mxu0 0.0
  %503 = vmatmul.mubr.f32.gmra.mrb[0].mxu0 %v215
  %v504 = vpop.f32.mrb[0].mxu0
  %v505 = vadd.f32 0.0, %v504
  %v506 = vpop.f32.mrb[0].mxu0
  %507 = vmatprep.mubr.f32.mxu0 0.0
  %508 = vmatmul.mubr.f32.gmra.mrb[0].mxu0 %v218
  %v509 = vpop.f32.mrb[0].mxu0
  %v510 = vadd.f32 0.0, %v509
  %v511 = vpop.f32.mrb[0].mxu0
  %512 = vmatprep.mubr.f32.mxu0 0.0
  %513 = vmatmul.mubr.f32.gmra.mrb[0].mxu0 %v221
  %v514 = vpop.f32.mrb[0].mxu0
  %v515 = vadd.f32 0.0, %v514
  %v516 = vpop.f32.mrb[0].mxu0
  %517 = vmatprep.mubr.f32.mxu0 0.0
  %518 = vmatmul.mubr.f32.gmra.mrb[0].mxu0 %v224
  %v519 = vpop.f32.mrb[0].mxu0
  %v520 = vadd.f32 0.0, %v519
  %v521 = vpop.f32.mrb[0].mxu0
  %522 = vmatprep.mubr.f32.mxu0 0.0
  %523 = vmatmul.mubr.f32.gmra.mrb[0].mxu0 %v227
  %v524 = vpop.f32.mrb[0].mxu0
  %v525 = vadd.f32 0.0, %v524
  %v526 = vpop.f32.mrb[0].mxu0
  %527 = vmatprep.mubr.f32.mxu0 0.0
  %528 = vmatmul.mubr.f32.gmra.mrb[0].mxu0 %v230
  %v529 = vpop.f32.mrb[0].mxu0
  %v530 = vadd.f32 0.0, %v529
  %v531 = vpop.f32.mrb[0].mxu0
  %532 = vmatprep.mubr.f32.mxu0 0.0
  %533 = vmatmul.mubr.f32.gmra.mrb[0].mxu0 %v233
  %v534 = vpop.f32.mrb[0].mxu0
  %v535 = vadd.f32 0.0, %v534
  %v536 = vpop.f32.mrb[0].mxu0
  %537 = vmatprep.mubr.f32.mxu0 0.0
  %538 = vmatmul.mubr.f32.gmra.mrb[0].mxu0 %v236
  %v539 = vpop.f32.mrb[0].mxu0
  %v540 = vadd.f32 0.0, %v539
  %v541 = vpop.f32.mrb[0].mxu0
  %542 = vmatprep.mubr.f32.mxu0 0.0
  %543 = vmatmul.mubr.f32.gmra.mrb[0].mxu0 %v239
  %v544 = vpop.f32.mrb[0].mxu0
  %v545 = vadd.f32 0.0, %v544
  %v546 = vpop.f32.mrb[0].mxu0
  %547 = vmatprep.mubr.f32.mxu0 0.0
  %548 = vmatmul.mubr.f32.gmra.mrb[0].mxu0 %v242
  %v549 = vpop.f32.mrb[0].mxu0
  %v550 = vadd.f32 0.0, %v549
  %v551 = vpop.f32.mrb[0].mxu0
  %552 = vmatprep.mubr.f32.mxu0 0.0
  %553 = vmatmul.mubr.f32.gmra.mrb[0].mxu0 %v245
  %v554 = vpop.f32.mrb[0].mxu0
  %v555 = vadd.f32 0.0, %v554
  %v556 = vpop.f32.mrb[0].mxu0
  %557 = vmatprep.mubr.f32.mxu0 0.0
  %558 = vmatmul.mubr.f32.gmra.mrb[0].mxu0 %v248
  %v559 = vpop.f32.mrb[0].mxu0
  %v560 = vadd.f32 0.0, %v559
  %v561 = vpop.f32.mrb[0].mxu0
  %562 = vmatprep.mubr.f32.mxu0 0.0
  %563 = vmatmul.mubr.f32.gmra.mrb[0].mxu0 %v251
  %v564 = vpop.f32.mrb[0].mxu0
  %v565 = vadd.f32 0.0, %v564
  %v566 = vpop.f32.mrb[0].mxu0
  %567 = vmatprep.mubr.f32.mxu0 0.0
  %568 = vmatmul.mubr.f32.gmra.mrb[0].mxu0 %v254
  %v569 = vpop.f32.mrb[0].mxu0
  %v570 = vadd.f32 0.0, %v569
  %v571 = vpop.f32.mrb[0].mxu0
  %572 = vmatprep.mubr.f32.mxu0 0.0
  %573 = vmatmul.mubr.f32.gmra.mrb[0].mxu0 %v257
  %v574 = vpop.f32.mrb[0].mxu0
  %v575 = vadd.f32 0.0, %v574
  %v576 = vpop.f32.mrb[0].mxu0
  %577 = vmatprep.mubr.f32.mxu0 0.0
  %578 = vmatmul.mubr.f32.gmra.mrb[0].mxu0 %v260
  %v579 = vpop.f32.mrb[0].mxu0
  %v580 = vadd.f32 0.0, %v579
  %v581 = vpop.f32.mrb[0].mxu0
  %582 = vmatprep.mubr.f32.mxu0 0.0
  %583 = vmatmul.mubr.f32.gmra.mrb[0].mxu0 %v263
  %v584 = vpop.f32.mrb[0].mxu0
  %v585 = vadd.f32 0.0, %v584
  %v586 = vpop.f32.mrb[0].mxu0
  %587 = vmatprep.mubr.f32.mxu0 0.0
  %588 = vmatmul.mubr.f32.gmra.mrb[0].mxu0 %v266
  %v589 = vpop.f32.mrb[0].mxu0
  %v590 = vadd.f32 0.0, %v589
  %v591 = vpop.f32.mrb[0].mxu0
  %592 = vmatprep.mubr.f32.mxu0 0.0
  %593 = vmatmul.mubr.f32.gmra.mrb[0].mxu0 %v269
  %v594 = vpop.f32.mrb[0].mxu0
  %v595 = vadd.f32 0.0, %v594
  %v596 = vpop.f32.mrb[0].mxu0
  %597 = vmatprep.mubr.f32.mxu0 0.0
  %598 = vmatmul.mubr.f32.gmra.mrb[0].mxu0 %v272
  %v599 = vpop.f32.mrb[0].mxu0
  %v600 = vadd.f32 0.0, %v599
  %v601 = vpop.f32.mrb[0].mxu0
  %602 = vmatprep.mubr.f32.mxu0 0.0
  %603 = vmatmul.mubr.f32.gmra.mrb[0].mxu0 %v275
  %v604 = vpop.f32.mrb[0].mxu0
  %v605 = vadd.f32 0.0, %v604
  %v606 = vpop.f32.mrb[0].mxu0
  %607 = vmatprep.mubr.f32.mxu0 0.0
  %608 = vmatmul.mubr.f32.gmra.mrb[0].mxu0 %v278
  %v609 = vpop.f32.mrb[0].mxu0
  %v610 = vadd.f32 0.0, %v609
  %v611 = vpop.f32.mrb[0].mxu0
  %612 = vmatprep.mubr.f32.mxu0 0.0
  %613 = vmatmul.mubr.f32.gmra.mrb[0].mxu0 %v281
  %v614 = vpop.f32.mrb[0].mxu0
  %v615 = vadd.f32 0.0, %v614
  %v616 = vpop.f32.mrb[0].mxu0
  %617 = vmatprep.mubr.f32.mxu0 0.0
  %618 = vmatmul.mubr.f32.gmra.mrb[0].mxu0 %v284
  %v619 = vpop.f32.mrb[0].mxu0
  %v620 = vadd.f32 0.0, %v619
  %v621 = vpop.f32.mrb[0].mxu0
  %622 = vmatprep.mubr.f32.mxu0 0.0
  %623 = vmatmul.mubr.f32.gmra.mrb[0].mxu0 %v287
  %v624 = vpop.f32.mrb[0].mxu0
  %v625 = vadd.f32 0.0, %v624
  %v626 = vpop.f32.mrb[0].mxu0
  %627 = vmatprep.mubr.f32.mxu0 0.0
  %628 = vmatmul.mubr.f32.gmra.mrb[0].mxu0 %v290
  %v629 = vpop.f32.mrb[0].mxu0
  %v630 = vadd.f32 0.0, %v629
  %v631 = vpop.f32.mrb[0].mxu0
  %632 = vmatprep.mubr.f32.mxu0 0.0
  %633 = vmatmul.mubr.f32.gmra.mrb[0].mxu0 %v293
  %v634 = vpop.f32.mrb[0].mxu0
  %v635 = vadd.f32 0.0, %v634
  %v636 = vpop.f32.mrb[0].mxu0
  %637 = vmatprep.mubr.f32.mxu0 0.0
  %638 = vmatmul.mubr.f32.gmra.mrb[0].mxu0 %v296
  %v639 = vpop.f32.mrb[0].mxu0
  %v640 = vadd.f32 0.0, %v639
  %v641 = vpop.f32.mrb[0].mxu0
  %642 = vmatprep.mubr.f32.mxu0 0.0
  %643 = vmatmul.mubr.f32.gmra.mrb[0].mxu0 %v299
  %v644 = vpop.f32.mrb[0].mxu0
  %v645 = vadd.f32 0.0, %v644
  %v646 = vpop.f32.mrb[0].mxu0
  %647 = vmatprep.mubr.f32.mxu0 0.0
  %648 = vmatmul.mubr.f32.gmra.mrb[0].mxu0 %v302
  %v649 = vpop.f32.mrb[0].mxu0
  %v650 = vadd.f32 0.0, %v649
  %v651 = vpop.f32.mrb[0].mxu0
  %652 = vmatprep.mubr.f32.mxu0 0.0
  %653 = vmatmul.mubr.f32.gmra.mrb[0].mxu0 %v305
  %v654 = vpop.f32.mrb[0].mxu0
  %v655 = vadd.f32 0.0, %v654
  %v656 = vpop.f32.mrb[0].mxu0
  %657 = vmatprep.mubr.f32.mxu0 0.0
  %658 = vmatmul.mubr.f32.gmra.mrb[0].mxu0 %v308
  %v659 = vpop.f32.mrb[0].mxu0
  %v660 = vadd.f32 0.0, %v659
  %v661 = vpop.f32.mrb[0].mxu0
  %662 = vmatprep.mubr.f32.mxu0 0.0
  %663 = vmatmul.mubr.f32.gmra.mrb[0].mxu0 %v311
  %v664 = vpop.f32.mrb[0].mxu0
  %v665 = vadd.f32 0.0, %v664
  %v666 = vpop.f32.mrb[0].mxu0
  %667 = vmatprep.mubr.f32.mxu0 0.0
  %668 = vmatmul.mubr.f32.gmra.mrb[0].mxu0 %v314
  %v669 = vpop.f32.mrb[0].mxu0
  %v670 = vadd.f32 0.0, %v669
  %v671 = vpop.f32.mrb[0].mxu0
  %672 = vmatprep.mubr.f32.mxu0 0.0
  %673 = vmatmul.mubr.f32.gmra.mrb[0].mxu0 %v317
  %v674 = vpop.f32.mrb[0].mxu0
  %v675 = vadd.f32 0.0, %v674
  %v676 = vpop.f32.mrb[0].mxu0
  %677 = vmatprep.mubr.f32.mxu0 0.0
  %678 = vmatmul.mubr.f32.gmra.mrb[0].mxu0 %v320
  %v679 = vpop.f32.mrb[0].mxu0
  %v680 = vadd.f32 0.0, %v679
  %v681 = vpop.f32.mrb[0].mxu0
  %682 = vmatprep.mubr.f32.mxu0 0.0
  %683 = vmatmul.mubr.f32.gmra.mrb[0].mxu0 %v323
  %v684 = vpop.f32.mrb[0].mxu0
  %v685 = vadd.f32 0.0, %v684
  %v686 = vpop.f32.mrb[0].mxu0
  %687 = vmatprep.mubr.f32.mxu0 0.0
  %688 = vmatmul.mubr.f32.gmra.mrb[0].mxu0 %v326
  %v689 = vpop.f32.mrb[0].mxu0
  %v690 = vadd.f32 0.0, %v689
  %v691 = vpop.f32.mrb[0].mxu0
  %692 = vmatprep.mubr.f32.mxu0 0.0
  %693 = vmatmul.mubr.f32.gmra.mrb[0].mxu0 %v329
  %v694 = vpop.f32.mrb[0].mxu0
  %v695 = vadd.f32 0.0, %v694
  %v696 = vpop.f32.mrb[0].mxu0
  %697 = vmatprep.mubr.f32.mxu0 0.0
  %698 = vmatmul.mubr.f32.gmra.mrb[0].mxu0 %v332
  %v699 = vpop.f32.mrb[0].mxu0
  %v700 = vadd.f32 0.0, %v699
  %v701 = vpop.f32.mrb[0].mxu0
  %702 = vmatprep.mubr.f32.mxu0 0.0
  %703 = vmatmul.mubr.f32.gmra.mrb[0].mxu0 %v335
  %v704 = vpop.f32.mrb[0].mxu0
  %v705 = vadd.f32 0.0, %v704
  %v706 = vpop.f32.mrb[0].mxu0
  %707 = vmatprep.mubr.f32.mxu0 0.0
  %708 = vmatmul.mubr.f32.gmra.mrb[0].mxu0 %v338
  %v709 = vpop.f32.mrb[0].mxu0
  %v710 = vadd.f32 0.0, %v709
  %v711 = vpop.f32.mrb[0].mxu0
  %712 = vmatprep.mubr.f32.mxu0 0.0
  %713 = vmatmul.mubr.f32.gmra.mrb[0].mxu0 %v341
  %v714 = vpop.f32.mrb[0].mxu0
  %v715 = vadd.f32 0.0, %v714
  %v716 = vpop.f32.mrb[0].mxu0
  %717 = vmatprep.mubr.f32.mxu0 0.0
  %718 = vmatmul.mubr.f32.gmra.mrb[0].mxu0 %v344
  %v719 = vpop.f32.mrb[0].mxu0
  %v720 = vadd.f32 0.0, %v719
  %v721 = vpop.f32.mrb[0].mxu0
  %722 = vmatprep.mubr.f32.mxu0 0.0
  %723 = vmatmul.mubr.f32.gmra.mrb[0].mxu0 %v347
  %v724 = vpop.f32.mrb[0].mxu0
  %v725 = vadd.f32 0.0, %v724
  %v726 = vpop.f32.mrb[0].mxu0
  %727 = vmatprep.mubr.f32.mxu0 0.0
  %728 = vmatmul.mubr.f32.gmra.mrb[0].mxu0 %v350
  %v729 = vpop.f32.mrb[0].mxu0
  %v730 = vadd.f32 0.0, %v729
  %v731 = vpop.f32.mrb[0].mxu0
  %732 = vmatprep.mubr.f32.mxu0 0.0
  %733 = vmatmul.mubr.f32.gmra.mrb[0].mxu0 %v353
  %v734 = vpop.f32.mrb[0].mxu0
  %v735 = vadd.f32 0.0, %v734
  %v736 = vpop.f32.mrb[0].mxu0
  %737 = vmatprep.mubr.f32.mxu0 0.0
  %738 = vmatmul.mubr.f32.gmra.mrb[0].mxu0 %v356
  %v739 = vpop.f32.mrb[0].mxu0
  %v740 = vadd.f32 0.0, %v739
  %v741 = vpop.f32.mrb[0].mxu0
  %742 = vdwg.mxu0
  %vm743 = vcmask 64512
  %v745 = vsel %vm743, %v32, 0
  %v748 = vsel %vm743, %v33, 0
  %v751 = vsel %vm743, %v34, 0
  %v754 = vsel %vm743, %v35, 0
  %v757 = vsel %vm743, %v36, 0
  %v760 = vsel %vm743, %v37, 0
  %v763 = vsel %vm743, %v38, 0
  %v766 = vsel %vm743, %v39, 0
  %v769 = vsel %vm743, %v40, 0
  %v772 = vsel %vm743, %v41, 0
  %v775 = vsel %vm743, %v42, 0
  %v778 = vsel %vm743, %v43, 0
  %v781 = vsel %vm743, %v44, 0
  %v784 = vsel %vm743, %v45, 0
  %v787 = vsel %vm743, %v46, 0
  %v790 = vsel %vm743, %v47, 0
  %v793 = vsel %vm743, %v48, 0
  %v796 = vsel %vm743, %v49, 0
  %v799 = vsel %vm743, %v50, 0
  %v802 = vsel %vm743, %v51, 0
  %v805 = vsel %vm743, %v52, 0
  %v808 = vsel %vm743, %v53, 0
  %v811 = vsel %vm743, %v54, 0
  %v814 = vsel %vm743, %v55, 0
  %v817 = vsel %vm743, %v56, 0
  %v820 = vsel %vm743, %v57, 0
  %v823 = vsel %vm743, %v58, 0
  %v826 = vsel %vm743, %v59, 0
  %v829 = vsel %vm743, %v60, 0
  %v832 = vsel %vm743, %v61, 0
  %v835 = vsel %vm743, %v62, 0
  %v838 = vsel %vm743, %v63, 0
  %v841 = vsel %vm743, %v64, 0
  %v844 = vsel %vm743, %v65, 0
  %v847 = vsel %vm743, %v66, 0
  %v850 = vsel %vm743, %v67, 0
  %v853 = vsel %vm743, %v68, 0
  %v856 = vsel %vm743, %v69, 0
  %v859 = vsel %vm743, %v70, 0
  %v862 = vsel %vm743, %v71, 0
  %v865 = vsel %vm743, %v72, 0
  %v868 = vsel %vm743, %v73, 0
  %v871 = vsel %vm743, %v74, 0
  %v874 = vsel %vm743, %v75, 0
  %v877 = vsel %vm743, %v76, 0
  %v880 = vsel %vm743, %v77, 0
  %v883 = vsel %vm743, %v78, 0
  %v886 = vsel %vm743, %v79, 0
  %v889 = vsel %vm743, %v80, 0
  %v892 = vsel %vm743, %v81, 0
  %v895 = vsel %vm743, %v82, 0
  %v898 = vsel %vm743, %v83, 0
  %v901 = vsel %vm743, %v84, 0
  %v904 = vsel %vm743, %v85, 0
  %v907 = vsel %vm743, %v86, 0
  %v910 = vsel %vm743, %v87, 0
  %v913 = vsel %vm743, %v88, 0
  %v916 = vsel %vm743, %v89, 0
  %v919 = vsel %vm743, %v90, 0
  %v922 = vsel %vm743, %v91, 0
  %v925 = vsel %vm743, %v92, 0
  %v928 = vsel %vm743, %v93, 0
  %v931 = vsel %vm743, %v94, 0
  %v934 = vsel %vm743, %v95, 0
  %936 = vmatprep.subr.mxu0 0.0
  %937 = vmatpush1.msra.mxu0 %v96
  %938 = vmatprep.subr.mxu0 0.0
  %939 = vmatpush1.msra.mxu0 0.0
  %940 = vmatprep.subr.mxu0 0.0
  %941 = vmatpush1.msra.mxu0 0.0
  %942 = vmatprep.subr.mxu0 0.0
  %943 = vmatpush1.msra.mxu0 0.0
  %944 = vmatprep.subr.mxu0 0.0
  %945 = vmatpush1.msra.mxu0 0.0
  %946 = vmatprep.subr.mxu0 0.0
  %947 = vmatpush1.msra.mxu0 0.0
  %948 = vmatprep.subr.mxu0 0.0
  %949 = vmatpush1.msra.mxu0 0.0
  %950 = vmatprep.subr.mxu0 0.0
  %951 = vmatpush1.msra.mxu0 0.0
  %952 = vmatprep.subr.mxu0 0.0
  %953 = vmatpush1.msra.mxu0 0.0
  %954 = vmatprep.subr.mxu0 0.0
  %955 = vmatpush1.msra.mxu0 0.0
  %956 = vmatprep.subr.mxu0 0.0
  %957 = vmatpush1.msra.mxu0 0.0
  %958 = vmatprep.subr.mxu0 0.0
  %959 = vmatpush1.msra.mxu0 0.0
  %960 = vmatprep.subr.mxu0 0.0
  %961 = vmatpush1.msra.mxu0 0.0
  %962 = vmatprep.subr.mxu0 0.0
  %963 = vmatpush1.msra.mxu0 0.0
  %964 = vmatprep.subr.mxu0 0.0
  %965 = vmatpush1.msra.mxu0 0.0
  %966 = vmatprep.subr.mxu0 0.0
  %967 = vmatpush1.msra.mxu0 0.0
  %968 = vmatprep.subr.mxu0 0.0
  %969 = vmatpush1.msra.mxu0 0.0
  %970 = vmatprep.subr.mxu0 0.0
  %971 = vmatpush1.msra.mxu0 0.0
  %972 = vmatprep.subr.mxu0 0.0
  %973 = vmatpush1.msra.mxu0 0.0
  %974 = vmatprep.subr.mxu0 0.0
  %975 = vmatpush1.msra.mxu0 0.0
  %976 = vmatprep.subr.mxu0 0.0
  %977 = vmatpush1.msra.mxu0 0.0
  %978 = vmatprep.subr.mxu0 0.0
  %979 = vmatpush1.msra.mxu0 0.0
  %980 = vmatprep.subr.mxu0 0.0
  %981 = vmatpush1.msra.mxu0 0.0
  %982 = vmatprep.subr.mxu0 0.0
  %983 = vmatpush1.msra.mxu0 0.0
  %984 = vmatprep.subr.mxu0 0.0
  %985 = vmatpush1.msra.mxu0 0.0
  %986 = vmatprep.subr.mxu0 0.0
  %987 = vmatpush1.msra.mxu0 0.0
  %988 = vmatprep.subr.mxu0 0.0
  %989 = vmatpush1.msra.mxu0 0.0
  %990 = vmatprep.subr.mxu0 0.0
  %991 = vmatpush1.msra.mxu0 0.0
  %992 = vmatprep.subr.mxu0 0.0
  %993 = vmatpush1.msra.mxu0 0.0
  %994 = vmatprep.subr.mxu0 0.0
  %995 = vmatpush1.msra.mxu0 0.0
  %996 = vmatprep.subr.mxu0 0.0
  %997 = vmatpush1.msra.mxu0 0.0
  %998 = vmatprep.subr.mxu0 0.0
  %999 = vmatpush1.msra.mxu0 0.0
  %1000 = vmatprep.mubr.f32.mxu0 0.0
  %1001 = vmatmul.mubr.f32.gmra.mrb[0].mxu0 %v745
  %v1002 = vpop.f32.mrb[0].mxu0
  %v1003 = vadd.f32 %v425, %v1002
  %v1004 = vpop.f32.mrb[0].mxu0
  %1005 = vmatprep.mubr.f32.mxu0 0.0
  %1006 = vmatmul.mubr.f32.gmra.mrb[0].mxu0 %v748
  %v1007 = vpop.f32.mrb[0].mxu0
  %v1008 = vadd.f32 %v430, %v1007
  %v1009 = vpop.f32.mrb[0].mxu0
  %1010 = vmatprep.mubr.f32.mxu0 0.0
  %1011 = vmatmul.mubr.f32.gmra.mrb[0].mxu0 %v751
  %v1012 = vpop.f32.mrb[0].mxu0
  %v1013 = vadd.f32 %v435, %v1012
  %v1014 = vpop.f32.mrb[0].mxu0
  %1015 = vmatprep.mubr.f32.mxu0 0.0
  %1016 = vmatmul.mubr.f32.gmra.mrb[0].mxu0 %v754
  %v1017 = vpop.f32.mrb[0].mxu0
  %v1018 = vadd.f32 %v440, %v1017
  %v1019 = vpop.f32.mrb[0].mxu0
  %1020 = vmatprep.mubr.f32.mxu0 0.0
  %1021 = vmatmul.mubr.f32.gmra.mrb[0].mxu0 %v757
  %v1022 = vpop.f32.mrb[0].mxu0
  %v1023 = vadd.f32 %v445, %v1022
  %v1024 = vpop.f32.mrb[0].mxu0
  %1025 = vmatprep.mubr.f32.mxu0 0.0
  %1026 = vmatmul.mubr.f32.gmra.mrb[0].mxu0 %v760
  %v1027 = vpop.f32.mrb[0].mxu0
  %v1028 = vadd.f32 %v450, %v1027
  %v1029 = vpop.f32.mrb[0].mxu0
  %1030 = vmatprep.mubr.f32.mxu0 0.0
  %1031 = vmatmul.mubr.f32.gmra.mrb[0].mxu0 %v763
  %v1032 = vpop.f32.mrb[0].mxu0
  %v1033 = vadd.f32 %v455, %v1032
  %v1034 = vpop.f32.mrb[0].mxu0
  %1035 = vmatprep.mubr.f32.mxu0 0.0
  %1036 = vmatmul.mubr.f32.gmra.mrb[0].mxu0 %v766
  %v1037 = vpop.f32.mrb[0].mxu0
  %v1038 = vadd.f32 %v460, %v1037
  %v1039 = vpop.f32.mrb[0].mxu0
  %1040 = vmatprep.mubr.f32.mxu0 0.0
  %1041 = vmatmul.mubr.f32.gmra.mrb[0].mxu0 %v769
  %v1042 = vpop.f32.mrb[0].mxu0
  %v1043 = vadd.f32 %v465, %v1042
  %v1044 = vpop.f32.mrb[0].mxu0
  %1045 = vmatprep.mubr.f32.mxu0 0.0
  %1046 = vmatmul.mubr.f32.gmra.mrb[0].mxu0 %v772
  %v1047 = vpop.f32.mrb[0].mxu0
  %v1048 = vadd.f32 %v470, %v1047
  %v1049 = vpop.f32.mrb[0].mxu0
  %1050 = vmatprep.mubr.f32.mxu0 0.0
  %1051 = vmatmul.mubr.f32.gmra.mrb[0].mxu0 %v775
  %v1052 = vpop.f32.mrb[0].mxu0
  %v1053 = vadd.f32 %v475, %v1052
  %v1054 = vpop.f32.mrb[0].mxu0
  %1055 = vmatprep.mubr.f32.mxu0 0.0
  %1056 = vmatmul.mubr.f32.gmra.mrb[0].mxu0 %v778
  %v1057 = vpop.f32.mrb[0].mxu0
  %v1058 = vadd.f32 %v480, %v1057
  %v1059 = vpop.f32.mrb[0].mxu0
  %1060 = vmatprep.mubr.f32.mxu0 0.0
  %1061 = vmatmul.mubr.f32.gmra.mrb[0].mxu0 %v781
  %v1062 = vpop.f32.mrb[0].mxu0
  %v1063 = vadd.f32 %v485, %v1062
  %v1064 = vpop.f32.mrb[0].mxu0
  %1065 = vmatprep.mubr.f32.mxu0 0.0
  %1066 = vmatmul.mubr.f32.gmra.mrb[0].mxu0 %v784
  %v1067 = vpop.f32.mrb[0].mxu0
  %v1068 = vadd.f32 %v490, %v1067
  %v1069 = vpop.f32.mrb[0].mxu0
  %1070 = vmatprep.mubr.f32.mxu0 0.0
  %1071 = vmatmul.mubr.f32.gmra.mrb[0].mxu0 %v787
  %v1072 = vpop.f32.mrb[0].mxu0
  %v1073 = vadd.f32 %v495, %v1072
  %v1074 = vpop.f32.mrb[0].mxu0
  %1075 = vmatprep.mubr.f32.mxu0 0.0
  %1076 = vmatmul.mubr.f32.gmra.mrb[0].mxu0 %v790
  %v1077 = vpop.f32.mrb[0].mxu0
  %v1078 = vadd.f32 %v500, %v1077
  %v1079 = vpop.f32.mrb[0].mxu0
  %1080 = vmatprep.mubr.f32.mxu0 0.0
  %1081 = vmatmul.mubr.f32.gmra.mrb[0].mxu0 %v793
  %v1082 = vpop.f32.mrb[0].mxu0
  %v1083 = vadd.f32 %v505, %v1082
  %v1084 = vpop.f32.mrb[0].mxu0
  %1085 = vmatprep.mubr.f32.mxu0 0.0
  %1086 = vmatmul.mubr.f32.gmra.mrb[0].mxu0 %v796
  %v1087 = vpop.f32.mrb[0].mxu0
  %v1088 = vadd.f32 %v510, %v1087
  %v1089 = vpop.f32.mrb[0].mxu0
  %1090 = vmatprep.mubr.f32.mxu0 0.0
  %1091 = vmatmul.mubr.f32.gmra.mrb[0].mxu0 %v799
  %v1092 = vpop.f32.mrb[0].mxu0
  %v1093 = vadd.f32 %v515, %v1092
  %v1094 = vpop.f32.mrb[0].mxu0
  %1095 = vmatprep.mubr.f32.mxu0 0.0
  %1096 = vmatmul.mubr.f32.gmra.mrb[0].mxu0 %v802
  %v1097 = vpop.f32.mrb[0].mxu0
  %v1098 = vadd.f32 %v520, %v1097
  %v1099 = vpop.f32.mrb[0].mxu0
  %1100 = vmatprep.mubr.f32.mxu0 0.0
  %1101 = vmatmul.mubr.f32.gmra.mrb[0].mxu0 %v805
  %v1102 = vpop.f32.mrb[0].mxu0
  %v1103 = vadd.f32 %v525, %v1102
  %v1104 = vpop.f32.mrb[0].mxu0
  %1105 = vmatprep.mubr.f32.mxu0 0.0
  %1106 = vmatmul.mubr.f32.gmra.mrb[0].mxu0 %v808
  %v1107 = vpop.f32.mrb[0].mxu0
  %v1108 = vadd.f32 %v530, %v1107
  %v1109 = vpop.f32.mrb[0].mxu0
  %1110 = vmatprep.mubr.f32.mxu0 0.0
  %1111 = vmatmul.mubr.f32.gmra.mrb[0].mxu0 %v811
  %v1112 = vpop.f32.mrb[0].mxu0
  %v1113 = vadd.f32 %v535, %v1112
  %v1114 = vpop.f32.mrb[0].mxu0
  %1115 = vmatprep.mubr.f32.mxu0 0.0
  %1116 = vmatmul.mubr.f32.gmra.mrb[0].mxu0 %v814
  %v1117 = vpop.f32.mrb[0].mxu0
  %v1118 = vadd.f32 %v540, %v1117
  %v1119 = vpop.f32.mrb[0].mxu0
  %1120 = vmatprep.mubr.f32.mxu0 0.0
  %1121 = vmatmul.mubr.f32.gmra.mrb[0].mxu0 %v817
  %v1122 = vpop.f32.mrb[0].mxu0
  %v1123 = vadd.f32 %v545, %v1122
  %v1124 = vpop.f32.mrb[0].mxu0
  %1125 = vmatprep.mubr.f32.mxu0 0.0
  %1126 = vmatmul.mubr.f32.gmra.mrb[0].mxu0 %v820
  %v1127 = vpop.f32.mrb[0].mxu0
  %v1128 = vadd.f32 %v550, %v1127
  %v1129 = vpop.f32.mrb[0].mxu0
  %1130 = vmatprep.mubr.f32.mxu0 0.0
  %1131 = vmatmul.mubr.f32.gmra.mrb[0].mxu0 %v823
  %v1132 = vpop.f32.mrb[0].mxu0
  %v1133 = vadd.f32 %v555, %v1132
  %v1134 = vpop.f32.mrb[0].mxu0
  %1135 = vmatprep.mubr.f32.mxu0 0.0
  %1136 = vmatmul.mubr.f32.gmra.mrb[0].mxu0 %v826
  %v1137 = vpop.f32.mrb[0].mxu0
  %v1138 = vadd.f32 %v560, %v1137
  %v1139 = vpop.f32.mrb[0].mxu0
  %1140 = vmatprep.mubr.f32.mxu0 0.0
  %1141 = vmatmul.mubr.f32.gmra.mrb[0].mxu0 %v829
  %v1142 = vpop.f32.mrb[0].mxu0
  %v1143 = vadd.f32 %v565, %v1142
  %v1144 = vpop.f32.mrb[0].mxu0
  %1145 = vmatprep.mubr.f32.mxu0 0.0
  %1146 = vmatmul.mubr.f32.gmra.mrb[0].mxu0 %v832
  %v1147 = vpop.f32.mrb[0].mxu0
  %v1148 = vadd.f32 %v570, %v1147
  %v1149 = vpop.f32.mrb[0].mxu0
  %1150 = vmatprep.mubr.f32.mxu0 0.0
  %1151 = vmatmul.mubr.f32.gmra.mrb[0].mxu0 %v835
  %v1152 = vpop.f32.mrb[0].mxu0
  %v1153 = vadd.f32 %v575, %v1152
  %v1154 = vpop.f32.mrb[0].mxu0
  %1155 = vmatprep.mubr.f32.mxu0 0.0
  %1156 = vmatmul.mubr.f32.gmra.mrb[0].mxu0 %v838
  %v1157 = vpop.f32.mrb[0].mxu0
  %v1158 = vadd.f32 %v580, %v1157
  %v1159 = vpop.f32.mrb[0].mxu0
  %1160 = vmatprep.mubr.f32.mxu0 0.0
  %1161 = vmatmul.mubr.f32.gmra.mrb[0].mxu0 %v841
  %v1162 = vpop.f32.mrb[0].mxu0
  %v1163 = vadd.f32 %v585, %v1162
  %v1164 = vpop.f32.mrb[0].mxu0
  %1165 = vmatprep.mubr.f32.mxu0 0.0
  %1166 = vmatmul.mubr.f32.gmra.mrb[0].mxu0 %v844
  %v1167 = vpop.f32.mrb[0].mxu0
  %v1168 = vadd.f32 %v590, %v1167
  %v1169 = vpop.f32.mrb[0].mxu0
  %1170 = vmatprep.mubr.f32.mxu0 0.0
  %1171 = vmatmul.mubr.f32.gmra.mrb[0].mxu0 %v847
  %v1172 = vpop.f32.mrb[0].mxu0
  %v1173 = vadd.f32 %v595, %v1172
  %v1174 = vpop.f32.mrb[0].mxu0
  %1175 = vmatprep.mubr.f32.mxu0 0.0
  %1176 = vmatmul.mubr.f32.gmra.mrb[0].mxu0 %v850
  %v1177 = vpop.f32.mrb[0].mxu0
  %v1178 = vadd.f32 %v600, %v1177
  %v1179 = vpop.f32.mrb[0].mxu0
  %1180 = vmatprep.mubr.f32.mxu0 0.0
  %1181 = vmatmul.mubr.f32.gmra.mrb[0].mxu0 %v853
  %v1182 = vpop.f32.mrb[0].mxu0
  %v1183 = vadd.f32 %v605, %v1182
  %v1184 = vpop.f32.mrb[0].mxu0
  %1185 = vmatprep.mubr.f32.mxu0 0.0
  %1186 = vmatmul.mubr.f32.gmra.mrb[0].mxu0 %v856
  %v1187 = vpop.f32.mrb[0].mxu0
  %v1188 = vadd.f32 %v610, %v1187
  %v1189 = vpop.f32.mrb[0].mxu0
  %1190 = vmatprep.mubr.f32.mxu0 0.0
  %1191 = vmatmul.mubr.f32.gmra.mrb[0].mxu0 %v859
  %v1192 = vpop.f32.mrb[0].mxu0
  %v1193 = vadd.f32 %v615, %v1192
  %v1194 = vpop.f32.mrb[0].mxu0
  %1195 = vmatprep.mubr.f32.mxu0 0.0
  %1196 = vmatmul.mubr.f32.gmra.mrb[0].mxu0 %v862
  %v1197 = vpop.f32.mrb[0].mxu0
  %v1198 = vadd.f32 %v620, %v1197
  %v1199 = vpop.f32.mrb[0].mxu0
  %1200 = vmatprep.mubr.f32.mxu0 0.0
  %1201 = vmatmul.mubr.f32.gmra.mrb[0].mxu0 %v865
  %v1202 = vpop.f32.mrb[0].mxu0
  %v1203 = vadd.f32 %v625, %v1202
  %v1204 = vpop.f32.mrb[0].mxu0
  %1205 = vmatprep.mubr.f32.mxu0 0.0
  %1206 = vmatmul.mubr.f32.gmra.mrb[0].mxu0 %v868
  %v1207 = vpop.f32.mrb[0].mxu0
  %v1208 = vadd.f32 %v630, %v1207
  %v1209 = vpop.f32.mrb[0].mxu0
  %1210 = vmatprep.mubr.f32.mxu0 0.0
  %1211 = vmatmul.mubr.f32.gmra.mrb[0].mxu0 %v871
  %v1212 = vpop.f32.mrb[0].mxu0
  %v1213 = vadd.f32 %v635, %v1212
  %v1214 = vpop.f32.mrb[0].mxu0
  %1215 = vmatprep.mubr.f32.mxu0 0.0
  %1216 = vmatmul.mubr.f32.gmra.mrb[0].mxu0 %v874
  %v1217 = vpop.f32.mrb[0].mxu0
  %v1218 = vadd.f32 %v640, %v1217
  %v1219 = vpop.f32.mrb[0].mxu0
  %1220 = vmatprep.mubr.f32.mxu0 0.0
  %1221 = vmatmul.mubr.f32.gmra.mrb[0].mxu0 %v877
  %v1222 = vpop.f32.mrb[0].mxu0
  %v1223 = vadd.f32 %v645, %v1222
  %v1224 = vpop.f32.mrb[0].mxu0
  %1225 = vmatprep.mubr.f32.mxu0 0.0
  %1226 = vmatmul.mubr.f32.gmra.mrb[0].mxu0 %v880
  %v1227 = vpop.f32.mrb[0].mxu0
  %v1228 = vadd.f32 %v650, %v1227
  %v1229 = vpop.f32.mrb[0].mxu0
  %1230 = vmatprep.mubr.f32.mxu0 0.0
  %1231 = vmatmul.mubr.f32.gmra.mrb[0].mxu0 %v883
  %v1232 = vpop.f32.mrb[0].mxu0
  %v1233 = vadd.f32 %v655, %v1232
  %v1234 = vpop.f32.mrb[0].mxu0
  %1235 = vmatprep.mubr.f32.mxu0 0.0
  %1236 = vmatmul.mubr.f32.gmra.mrb[0].mxu0 %v886
  %v1237 = vpop.f32.mrb[0].mxu0
  %v1238 = vadd.f32 %v660, %v1237
  %v1239 = vpop.f32.mrb[0].mxu0
  %1240 = vmatprep.mubr.f32.mxu0 0.0
  %1241 = vmatmul.mubr.f32.gmra.mrb[0].mxu0 %v889
  %v1242 = vpop.f32.mrb[0].mxu0
  %v1243 = vadd.f32 %v665, %v1242
  %v1244 = vpop.f32.mrb[0].mxu0
  %1245 = vmatprep.mubr.f32.mxu0 0.0
  %1246 = vmatmul.mubr.f32.gmra.mrb[0].mxu0 %v892
  %v1247 = vpop.f32.mrb[0].mxu0
  %v1248 = vadd.f32 %v670, %v1247
  %v1249 = vpop.f32.mrb[0].mxu0
  %1250 = vmatprep.mubr.f32.mxu0 0.0
  %1251 = vmatmul.mubr.f32.gmra.mrb[0].mxu0 %v895
  %v1252 = vpop.f32.mrb[0].mxu0
  %v1253 = vadd.f32 %v675, %v1252
  %v1254 = vpop.f32.mrb[0].mxu0
  %1255 = vmatprep.mubr.f32.mxu0 0.0
  %1256 = vmatmul.mubr.f32.gmra.mrb[0].mxu0 %v898
  %v1257 = vpop.f32.mrb[0].mxu0
  %v1258 = vadd.f32 %v680, %v1257
  %v1259 = vpop.f32.mrb[0].mxu0
  %1260 = vmatprep.mubr.f32.mxu0 0.0
  %1261 = vmatmul.mubr.f32.gmra.mrb[0].mxu0 %v901
  %v1262 = vpop.f32.mrb[0].mxu0
  %v1263 = vadd.f32 %v685, %v1262
  %v1264 = vpop.f32.mrb[0].mxu0
  %1265 = vmatprep.mubr.f32.mxu0 0.0
  %1266 = vmatmul.mubr.f32.gmra.mrb[0].mxu0 %v904
  %v1267 = vpop.f32.mrb[0].mxu0
  %v1268 = vadd.f32 %v690, %v1267
  %v1269 = vpop.f32.mrb[0].mxu0
  %1270 = vmatprep.mubr.f32.mxu0 0.0
  %1271 = vmatmul.mubr.f32.gmra.mrb[0].mxu0 %v907
  %v1272 = vpop.f32.mrb[0].mxu0
  %v1273 = vadd.f32 %v695, %v1272
  %v1274 = vpop.f32.mrb[0].mxu0
  %1275 = vmatprep.mubr.f32.mxu0 0.0
  %1276 = vmatmul.mubr.f32.gmra.mrb[0].mxu0 %v910
  %v1277 = vpop.f32.mrb[0].mxu0
  %v1278 = vadd.f32 %v700, %v1277
  %v1279 = vpop.f32.mrb[0].mxu0
  %1280 = vmatprep.mubr.f32.mxu0 0.0
  %1281 = vmatmul.mubr.f32.gmra.mrb[0].mxu0 %v913
  %v1282 = vpop.f32.mrb[0].mxu0
  %v1283 = vadd.f32 %v705, %v1282
  %v1284 = vpop.f32.mrb[0].mxu0
  %1285 = vmatprep.mubr.f32.mxu0 0.0
  %1286 = vmatmul.mubr.f32.gmra.mrb[0].mxu0 %v916
  %v1287 = vpop.f32.mrb[0].mxu0
  %v1288 = vadd.f32 %v710, %v1287
  %v1289 = vpop.f32.mrb[0].mxu0
  %1290 = vmatprep.mubr.f32.mxu0 0.0
  %1291 = vmatmul.mubr.f32.gmra.mrb[0].mxu0 %v919
  %v1292 = vpop.f32.mrb[0].mxu0
  %v1293 = vadd.f32 %v715, %v1292
  %v1294 = vpop.f32.mrb[0].mxu0
  %1295 = vmatprep.mubr.f32.mxu0 0.0
  %1296 = vmatmul.mubr.f32.gmra.mrb[0].mxu0 %v922
  %v1297 = vpop.f32.mrb[0].mxu0
  %v1298 = vadd.f32 %v720, %v1297
  %v1299 = vpop.f32.mrb[0].mxu0
  %1300 = vmatprep.mubr.f32.mxu0 0.0
  %1301 = vmatmul.mubr.f32.gmra.mrb[0].mxu0 %v925
  %v1302 = vpop.f32.mrb[0].mxu0
  %v1303 = vadd.f32 %v725, %v1302
  %v1304 = vpop.f32.mrb[0].mxu0
  %1305 = vmatprep.mubr.f32.mxu0 0.0
  %1306 = vmatmul.mubr.f32.gmra.mrb[0].mxu0 %v928
  %v1307 = vpop.f32.mrb[0].mxu0
  %v1308 = vadd.f32 %v730, %v1307
  %v1309 = vpop.f32.mrb[0].mxu0
  %1310 = vmatprep.mubr.f32.mxu0 0.0
  %1311 = vmatmul.mubr.f32.gmra.mrb[0].mxu0 %v931
  %v1312 = vpop.f32.mrb[0].mxu0
  %v1313 = vadd.f32 %v735, %v1312
  %v1314 = vpop.f32.mrb[0].mxu0
  %1315 = vmatprep.mubr.f32.mxu0 0.0
  %1316 = vmatmul.mubr.f32.gmra.mrb[0].mxu0 %v934
  %v1317 = vpop.f32.mrb[0].mxu0
  %v1318 = vadd.f32 %v740, %v1317
  %v1319 = vpop.f32.mrb[0].mxu0
  %1320 = vdwg.mxu0
  %v1321 = vld [vmem:[%s4] sm:$0x1]
  %v1323 = vlaneseq
  %v1324 = vshrl.u32 %v1323, 7
  %v1325 = vsub.s32 0, %v1324
  %v1326 = vrot.slane %v1321, %v1325
  %v1328 = vadd.f32 %v1003, %v1326
  %v1329 = vadd.f32 %v1008, %v1326
  %v1330 = vadd.f32 %v1013, %v1326
  %v1331 = vadd.f32 %v1018, %v1326
  %v1332 = vadd.f32 %v1023, %v1326
  %v1333 = vadd.f32 %v1028, %v1326
  %v1334 = vadd.f32 %v1033, %v1326
  %v1335 = vadd.f32 %v1038, %v1326
  %v1336 = vadd.f32 %v1043, %v1326
  %v1337 = vadd.f32 %v1048, %v1326
  %v1338 = vadd.f32 %v1053, %v1326
  %v1339 = vadd.f32 %v1058, %v1326
  %v1340 = vadd.f32 %v1063, %v1326
  %v1341 = vadd.f32 %v1068, %v1326
  %v1342 = vadd.f32 %v1073, %v1326
  %v1343 = vadd.f32 %v1078, %v1326
  %v1344 = vadd.f32 %v1083, %v1326
  %v1345 = vadd.f32 %v1088, %v1326
  %v1346 = vadd.f32 %v1093, %v1326
  %v1347 = vadd.f32 %v1098, %v1326
  %v1348 = vadd.f32 %v1103, %v1326
  %v1349 = vadd.f32 %v1108, %v1326
  %v1350 = vadd.f32 %v1113, %v1326
  %v1351 = vadd.f32 %v1118, %v1326
  %v1352 = vadd.f32 %v1123, %v1326
  %v1353 = vadd.f32 %v1128, %v1326
  %v1354 = vadd.f32 %v1133, %v1326
  %v1355 = vadd.f32 %v1138, %v1326
  %v1356 = vadd.f32 %v1143, %v1326
  %v1357 = vadd.f32 %v1148, %v1326
  %v1358 = vadd.f32 %v1153, %v1326
  %v1359 = vadd.f32 %v1158, %v1326
  %v1360 = vadd.f32 %v1163, %v1326
  %v1361 = vadd.f32 %v1168, %v1326
  %v1362 = vadd.f32 %v1173, %v1326
  %v1363 = vadd.f32 %v1178, %v1326
  %v1364 = vadd.f32 %v1183, %v1326
  %v1365 = vadd.f32 %v1188, %v1326
  %v1366 = vadd.f32 %v1193, %v1326
  %v1367 = vadd.f32 %v1198, %v1326
  %v1368 = vadd.f32 %v1203, %v1326
  %v1369 = vadd.f32 %v1208, %v1326
  %v1370 = vadd.f32 %v1213, %v1326
  %v1371 = vadd.f32 %v1218, %v1326
  %v1372 = vadd.f32 %v1223, %v1326
  %v1373 = vadd.f32 %v1228, %v1326
  %v1374 = vadd.f32 %v1233, %v1326
  %v1375 = vadd.f32 %v1238, %v1326
  %v1376 = vadd.f32 %v1243, %v1326
  %v1377 = vadd.f32 %v1248, %v1326
  %v1378 = vadd.f32 %v1253, %v1326
  %v1379 = vadd.f32 %v1258, %v1326
  %v1380 = vadd.f32 %v1263, %v1326
  %v1381 = vadd.f32 %v1268, %v1326
  %v1382 = vadd.f32 %v1273, %v1326
  %v1383 = vadd.f32 %v1278, %v1326
  %v1384 = vadd.f32 %v1283, %v1326
  %v1385 = vadd.f32 %v1288, %v1326
  %v1386 = vadd.f32 %v1293, %v1326
  %v1387 = vadd.f32 %v1298, %v1326
  %v1388 = vadd.f32 %v1303, %v1326
  %v1389 = vadd.f32 %v1308, %v1326
  %v1390 = vadd.f32 %v1313, %v1326
  %v1391 = vadd.f32 %v1318, %v1326
  %vm1392 = vcmp.gt.f32.partialorder %v1328, 0.0
  %vm1393 = vcmp.gt.f32.partialorder %v1329, 0.0
  %vm1394 = vcmp.gt.f32.partialorder %v1330, 0.0
  %vm1395 = vcmp.gt.f32.partialorder %v1331, 0.0
  %vm1396 = vcmp.gt.f32.partialorder %v1332, 0.0
  %vm1397 = vcmp.gt.f32.partialorder %v1333, 0.0
  %vm1398 = vcmp.gt.f32.partialorder %v1334, 0.0
  %vm1399 = vcmp.gt.f32.partialorder %v1335, 0.0
  %vm1400 = vcmp.gt.f32.partialorder %v1336, 0.0
  %vm1401 = vcmp.gt.f32.partialorder %v1337, 0.0
  %vm1402 = vcmp.gt.f32.partialorder %v1338, 0.0
  %vm1403 = vcmp.gt.f32.partialorder %v1339, 0.0
  %vm1404 = vcmp.gt.f32.partialorder %v1340, 0.0
  %vm1405 = vcmp.gt.f32.partialorder %v1341, 0.0
  %vm1406 = vcmp.gt.f32.partialorder %v1342, 0.0
  %vm1407 = vcmp.gt.f32.partialorder %v1343, 0.0
  %vm1408 = vcmp.gt.f32.partialorder %v1344, 0.0
  %vm1409 = vcmp.gt.f32.partialorder %v1345, 0.0
  %vm1410 = vcmp.gt.f32.partialorder %v1346, 0.0
  %vm1411 = vcmp.gt.f32.partialorder %v1347, 0.0
  %vm1412 = vcmp.gt.f32.partialorder %v1348, 0.0
  %vm1413 = vcmp.gt.f32.partialorder %v1349, 0.0
  %vm1414 = vcmp.gt.f32.partialorder %v1350, 0.0
  %vm1415 = vcmp.gt.f32.partialorder %v1351, 0.0
  %vm1416 = vcmp.gt.f32.partialorder %v1352, 0.0
  %vm1417 = vcmp.gt.f32.partialorder %v1353, 0.0
  %vm1418 = vcmp.gt.f32.partialorder %v1354, 0.0
  %vm1419 = vcmp.gt.f32.partialorder %v1355, 0.0
  %vm1420 = vcmp.gt.f32.partialorder %v1356, 0.0
  %vm1421 = vcmp.gt.f32.partialorder %v1357, 0.0
  %vm1422 = vcmp.gt.f32.partialorder %v1358, 0.0
  %vm1423 = vcmp.gt.f32.partialorder %v1359, 0.0
  %vm1424 = vcmp.gt.f32.partialorder %v1360, 0.0
  %vm1425 = vcmp.gt.f32.partialorder %v1361, 0.0
  %vm1426 = vcmp.gt.f32.partialorder %v1362, 0.0
  %vm1427 = vcmp.gt.f32.partialorder %v1363, 0.0
  %vm1428 = vcmp.gt.f32.partialorder %v1364, 0.0
  %vm1429 = vcmp.gt.f32.partialorder %v1365, 0.0
  %vm1430 = vcmp.gt.f32.partialorder %v1366, 0.0
  %vm1431 = vcmp.gt.f32.partialorder %v1367, 0.0
  %vm1432 = vcmp.gt.f32.partialorder %v1368, 0.0
  %vm1433 = vcmp.gt.f32.partialorder %v1369, 0.0
  %vm1434 = vcmp.gt.f32.partialorder %v1370, 0.0
  %vm1435 = vcmp.gt.f32.partialorder %v1371, 0.0
  %vm1436 = vcmp.gt.f32.partialorder %v1372, 0.0
  %vm1437 = vcmp.gt.f32.partialorder %v1373, 0.0
  %vm1438 = vcmp.gt.f32.partialorder %v1374, 0.0
  %vm1439 = vcmp.gt.f32.partialorder %v1375, 0.0
  %vm1440 = vcmp.gt.f32.partialorder %v1376, 0.0
  %vm1441 = vcmp.gt.f32.partialorder %v1377, 0.0
  %vm1442 = vcmp.gt.f32.partialorder %v1378, 0.0
  %vm1443 = vcmp.gt.f32.partialorder %v1379, 0.0
  %vm1444 = vcmp.gt.f32.partialorder %v1380, 0.0
  %vm1445 = vcmp.gt.f32.partialorder %v1381, 0.0
  %vm1446 = vcmp.gt.f32.partialorder %v1382, 0.0
  %vm1447 = vcmp.gt.f32.partialorder %v1383, 0.0
  %vm1448 = vcmp.gt.f32.partialorder %v1384, 0.0
  %vm1449 = vcmp.gt.f32.partialorder %v1385, 0.0
  %vm1450 = vcmp.gt.f32.partialorder %v1386, 0.0
  %vm1451 = vcmp.gt.f32.partialorder %v1387, 0.0
  %vm1452 = vcmp.gt.f32.partialorder %v1388, 0.0
  %vm1453 = vcmp.gt.f32.partialorder %v1389, 0.0
  %vm1454 = vcmp.gt.f32.partialorder %v1390, 0.0
  %vm1455 = vcmp.gt.f32.partialorder %v1391, 0.0
  %v1456 = vmul.f32 %v1328, 0.01
  %v1457 = vmul.f32 %v1329, 0.01
  %v1458 = vmul.f32 %v1330, 0.01
  %v1459 = vmul.f32 %v1331, 0.01
  %v1460 = vmul.f32 %v1332, 0.01
  %v1461 = vmul.f32 %v1333, 0.01
  %v1462 = vmul.f32 %v1334, 0.01
  %v1463 = vmul.f32 %v1335, 0.01
  %v1464 = vmul.f32 %v1336, 0.01
  %v1465 = vmul.f32 %v1337, 0.01
  %v1466 = vmul.f32 %v1338, 0.01
  %v1467 = vmul.f32 %v1339, 0.01
  %v1468 = vmul.f32 %v1340, 0.01
  %v1469 = vmul.f32 %v1341, 0.01
  %v1470 = vmul.f32 %v1342, 0.01
  %v1471 = vmul.f32 %v1343, 0.01
  %v1472 = vmul.f32 %v1344, 0.01
  %v1473 = vmul.f32 %v1345, 0.01
  %v1474 = vmul.f32 %v1346, 0.01
  %v1475 = vmul.f32 %v1347, 0.01
  %v1476 = vmul.f32 %v1348, 0.01
  %v1477 = vmul.f32 %v1349, 0.01
  %v1478 = vmul.f32 %v1350, 0.01
  %v1479 = vmul.f32 %v1351, 0.01
  %v1480 = vmul.f32 %v1352, 0.01
  %v1481 = vmul.f32 %v1353, 0.01
  %v1482 = vmul.f32 %v1354, 0.01
  %v1483 = vmul.f32 %v1355, 0.01
  %v1484 = vmul.f32 %v1356, 0.01
  %v1485 = vmul.f32 %v1357, 0.01
  %v1486 = vmul.f32 %v1358, 0.01
  %v1487 = vmul.f32 %v1359, 0.01
  %v1488 = vmul.f32 %v1360, 0.01
  %v1489 = vmul.f32 %v1361, 0.01
  %v1490 = vmul.f32 %v1362, 0.01
  %v1491 = vmul.f32 %v1363, 0.01
  %v1492 = vmul.f32 %v1364, 0.01
  %v1493 = vmul.f32 %v1365, 0.01
  %v1494 = vmul.f32 %v1366, 0.01
  %v1495 = vmul.f32 %v1367, 0.01
  %v1496 = vmul.f32 %v1368, 0.01
  %v1497 = vmul.f32 %v1369, 0.01
  %v1498 = vmul.f32 %v1370, 0.01
  %v1499 = vmul.f32 %v1371, 0.01
  %v1500 = vmul.f32 %v1372, 0.01
  %v1501 = vmul.f32 %v1373, 0.01
  %v1502 = vmul.f32 %v1374, 0.01
  %v1503 = vmul.f32 %v1375, 0.01
  %v1504 = vmul.f32 %v1376, 0.01
  %v1505 = vmul.f32 %v1377, 0.01
  %v1506 = vmul.f32 %v1378, 0.01
  %v1507 = vmul.f32 %v1379, 0.01
  %v1508 = vmul.f32 %v1380, 0.01
  %v1509 = vmul.f32 %v1381, 0.01
  %v1510 = vmul.f32 %v1382, 0.01
  %v1511 = vmul.f32 %v1383, 0.01
  %v1512 = vmul.f32 %v1384, 0.01
  %v1513 = vmul.f32 %v1385, 0.01
  %v1514 = vmul.f32 %v1386, 0.01
  %v1515 = vmul.f32 %v1387, 0.01
  %v1516 = vmul.f32 %v1388, 0.01
  %v1517 = vmul.f32 %v1389, 0.01
  %v1518 = vmul.f32 %v1390, 0.01
  %v1519 = vmul.f32 %v1391, 0.01
  %v1520 = vsel %vm1392, %v1328, %v1456
  %v1521 = vsel %vm1393, %v1329, %v1457
  %v1522 = vsel %vm1394, %v1330, %v1458
  %v1523 = vsel %vm1395, %v1331, %v1459
  %v1524 = vsel %vm1396, %v1332, %v1460
  %v1525 = vsel %vm1397, %v1333, %v1461
  %v1526 = vsel %vm1398, %v1334, %v1462
  %v1527 = vsel %vm1399, %v1335, %v1463
  %v1528 = vsel %vm1400, %v1336, %v1464
  %v1529 = vsel %vm1401, %v1337, %v1465
  %v1530 = vsel %vm1402, %v1338, %v1466
  %v1531 = vsel %vm1403, %v1339, %v1467
  %v1532 = vsel %vm1404, %v1340, %v1468
  %v1533 = vsel %vm1405, %v1341, %v1469
  %v1534 = vsel %vm1406, %v1342, %v1470
  %v1535 = vsel %vm1407, %v1343, %v1471
  %v1536 = vsel %vm1408, %v1344, %v1472
  %v1537 = vsel %vm1409, %v1345, %v1473
  %v1538 = vsel %vm1410, %v1346, %v1474
  %v1539 = vsel %vm1411, %v1347, %v1475
  %v1540 = vsel %vm1412, %v1348, %v1476
  %v1541 = vsel %vm1413, %v1349, %v1477
  %v1542 = vsel %vm1414, %v1350, %v1478
  %v1543 = vsel %vm1415, %v1351, %v1479
  %v1544 = vsel %vm1416, %v1352, %v1480
  %v1545 = vsel %vm1417, %v1353, %v1481
  %v1546 = vsel %vm1418, %v1354, %v1482
  %v1547 = vsel %vm1419, %v1355, %v1483
  %v1548 = vsel %vm1420, %v1356, %v1484
  %v1549 = vsel %vm1421, %v1357, %v1485
  %v1550 = vsel %vm1422, %v1358, %v1486
  %v1551 = vsel %vm1423, %v1359, %v1487
  %v1552 = vsel %vm1424, %v1360, %v1488
  %v1553 = vsel %vm1425, %v1361, %v1489
  %v1554 = vsel %vm1426, %v1362, %v1490
  %v1555 = vsel %vm1427, %v1363, %v1491
  %v1556 = vsel %vm1428, %v1364, %v1492
  %v1557 = vsel %vm1429, %v1365, %v1493
  %v1558 = vsel %vm1430, %v1366, %v1494
  %v1559 = vsel %vm1431, %v1367, %v1495
  %v1560 = vsel %vm1432, %v1368, %v1496
  %v1561 = vsel %vm1433, %v1369, %v1497
  %v1562 = vsel %vm1434, %v1370, %v1498
  %v1563 = vsel %vm1435, %v1371, %v1499
  %v1564 = vsel %vm1436, %v1372, %v1500
  %v1565 = vsel %vm1437, %v1373, %v1501
  %v1566 = vsel %vm1438, %v1374, %v1502
  %v1567 = vsel %vm1439, %v1375, %v1503
  %v1568 = vsel %vm1440, %v1376, %v1504
  %v1569 = vsel %vm1441, %v1377, %v1505
  %v1570 = vsel %vm1442, %v1378, %v1506
  %v1571 = vsel %vm1443, %v1379, %v1507
  %v1572 = vsel %vm1444, %v1380, %v1508
  %v1573 = vsel %vm1445, %v1381, %v1509
  %v1574 = vsel %vm1446, %v1382, %v1510
  %v1575 = vsel %vm1447, %v1383, %v1511
  %v1576 = vsel %vm1448, %v1384, %v1512
  %v1577 = vsel %vm1449, %v1385, %v1513
  %v1578 = vsel %vm1450, %v1386, %v1514
  %v1579 = vsel %vm1451, %v1387, %v1515
  %v1580 = vsel %vm1452, %v1388, %v1516
  %v1581 = vsel %vm1453, %v1389, %v1517
  %v1582 = vsel %vm1454, %v1390, %v1518
  %v1583 = vsel %vm1455, %v1391, %v1519
  %v1584 = vld [vmem:[%s5] sm:$0xff]
  %v1585 = vld [vmem:[%s5 + $0x8] sm:$0xff]
  %v1586 = vld [vmem:[%s5 + $0x10] sm:$0xff]
  %v1587 = vld [vmem:[%s5 + $0x18] sm:$0xff]
  %v1588 = vld [vmem:[%s5 + $0x20] sm:$0xff]
  %v1589 = vld [vmem:[%s5 + $0x28] sm:$0xff]
  %v1590 = vld [vmem:[%s5 + $0x30] sm:$0xff]
  %v1591 = vld [vmem:[%s5 + $0x38] sm:$0xff]
  %v1592 = vld [vmem:[%s5 + $0x40] sm:$0xff]
  %v1593 = vld [vmem:[%s5 + $0x48] sm:$0xff]
  %v1594 = vld [vmem:[%s5 + $0x50] sm:$0xff]
  %v1595 = vld [vmem:[%s5 + $0x58] sm:$0xff]
  %v1596 = vld [vmem:[%s5 + $0x60] sm:$0xff]
  %v1597 = vld [vmem:[%s5 + $0x68] sm:$0xff]
  %v1598 = vld [vmem:[%s5 + $0x70] sm:$0xff]
  %v1599 = vld [vmem:[%s5 + $0x78] sm:$0xff]
  %v1600 = vld [vmem:[%s6] sm:$0x1]
  %v1602 = vlaneseq
  %v1603 = vshrl.u32 %v1602, 7
  %v1604 = vsub.s32 0, %v1603
  %v1605 = vrot.slane %v1600, %v1604
  %1607 = vmatprep.subr.mxu0 0.0
  %1608 = vmatpush1.msra.mxu0 %v1584
  %1609 = vmatprep.subr.mxu0 0.0
  %1610 = vmatpush1.msra.mxu0 %v1585
  %1611 = vmatprep.subr.mxu0 0.0
  %1612 = vmatpush1.msra.mxu0 %v1586
  %1613 = vmatprep.subr.mxu0 0.0
  %1614 = vmatpush1.msra.mxu0 %v1587
  %1615 = vmatprep.subr.mxu0 0.0
  %1616 = vmatpush1.msra.mxu0 %v1588
  %1617 = vmatprep.subr.mxu0 0.0
  %1618 = vmatpush1.msra.mxu0 %v1589
  %1619 = vmatprep.subr.mxu0 0.0
  %1620 = vmatpush1.msra.mxu0 %v1590
  %1621 = vmatprep.subr.mxu0 0.0
  %1622 = vmatpush1.msra.mxu0 %v1591
  %1623 = vmatprep.subr.mxu0 0.0
  %1624 = vmatpush1.msra.mxu0 %v1592
  %1625 = vmatprep.subr.mxu0 0.0
  %1626 = vmatpush1.msra.mxu0 %v1593
  %1627 = vmatprep.subr.mxu0 0.0
  %1628 = vmatpush1.msra.mxu0 %v1594
  %1629 = vmatprep.subr.mxu0 0.0
  %1630 = vmatpush1.msra.mxu0 %v1595
  %1631 = vmatprep.subr.mxu0 0.0
  %1632 = vmatpush1.msra.mxu0 %v1596
  %1633 = vmatprep.subr.mxu0 0.0
  %1634 = vmatpush1.msra.mxu0 %v1597
  %1635 = vmatprep.subr.mxu0 0.0
  %1636 = vmatpush1.msra.mxu0 %v1598
  %1637 = vmatprep.subr.mxu0 0.0
  %1638 = vmatpush1.msra.mxu0 %v1599
  %1639 = vmatprep.subr.mxu0 0.0
  %1640 = vmatpush1.msra.mxu0 0.0
  %1641 = vmatprep.subr.mxu0 0.0
  %1642 = vmatpush1.msra.mxu0 0.0
  %1643 = vmatprep.subr.mxu0 0.0
  %1644 = vmatpush1.msra.mxu0 0.0
  %1645 = vmatprep.subr.mxu0 0.0
  %1646 = vmatpush1.msra.mxu0 0.0
  %1647 = vmatprep.subr.mxu0 0.0
  %1648 = vmatpush1.msra.mxu0 0.0
  %1649 = vmatprep.subr.mxu0 0.0
  %1650 = vmatpush1.msra.mxu0 0.0
  %1651 = vmatprep.subr.mxu0 0.0
  %1652 = vmatpush1.msra.mxu0 0.0
  %1653 = vmatprep.subr.mxu0 0.0
  %1654 = vmatpush1.msra.mxu0 0.0
  %1655 = vmatprep.subr.mxu0 0.0
  %1656 = vmatpush1.msra.mxu0 0.0
  %1657 = vmatprep.subr.mxu0 0.0
  %1658 = vmatpush1.msra.mxu0 0.0
  %1659 = vmatprep.subr.mxu0 0.0
  %1660 = vmatpush1.msra.mxu0 0.0
  %1661 = vmatprep.subr.mxu0 0.0
  %1662 = vmatpush1.msra.mxu0 0.0
  %1663 = vmatprep.subr.mxu0 0.0
  %1664 = vmatpush1.msra.mxu0 0.0
  %1665 = vmatprep.subr.mxu0 0.0
  %1666 = vmatpush1.msra.mxu0 0.0
  %1667 = vmatprep.subr.mxu0 0.0
  %1668 = vmatpush1.msra.mxu0 0.0
  %1669 = vmatprep.subr.mxu0 0.0
  %1670 = vmatpush1.msra.mxu0 0.0
  %1671 = vmatprep.mubr.f32.mxu0 0.0
  %1672 = vmatmul.mubr.f32.gmra.mrb[0].mxu0 %v1520
  %v1673 = vpop.f32.mrb[0].mxu0
  %v1674 = vadd.f32 %v1605, %v1673
  %v1675 = vpop.f32.mrb[0].mxu0
  %1676 = vmatprep.mubr.f32.mxu0 0.0
  %1677 = vmatmul.mubr.f32.gmra.mrb[0].mxu0 %v1521
  %v1678 = vpop.f32.mrb[0].mxu0
  %v1679 = vadd.f32 %v1605, %v1678
  %v1680 = vpop.f32.mrb[0].mxu0
  %1681 = vmatprep.mubr.f32.mxu0 0.0
  %1682 = vmatmul.mubr.f32.gmra.mrb[0].mxu0 %v1522
  %v1683 = vpop.f32.mrb[0].mxu0
  %v1684 = vadd.f32 %v1605, %v1683
  %v1685 = vpop.f32.mrb[0].mxu0
  %1686 = vmatprep.mubr.f32.mxu0 0.0
  %1687 = vmatmul.mubr.f32.gmra.mrb[0].mxu0 %v1523
  %v1688 = vpop.f32.mrb[0].mxu0
  %v1689 = vadd.f32 %v1605, %v1688
  %v1690 = vpop.f32.mrb[0].mxu0
  %1691 = vmatprep.mubr.f32.mxu0 0.0
  %1692 = vmatmul.mubr.f32.gmra.mrb[0].mxu0 %v1524
  %v1693 = vpop.f32.mrb[0].mxu0
  %v1694 = vadd.f32 %v1605, %v1693
  %v1695 = vpop.f32.mrb[0].mxu0
  %1696 = vmatprep.mubr.f32.mxu0 0.0
  %1697 = vmatmul.mubr.f32.gmra.mrb[0].mxu0 %v1525
  %v1698 = vpop.f32.mrb[0].mxu0
  %v1699 = vadd.f32 %v1605, %v1698
  %v1700 = vpop.f32.mrb[0].mxu0
  %1701 = vmatprep.mubr.f32.mxu0 0.0
  %1702 = vmatmul.mubr.f32.gmra.mrb[0].mxu0 %v1526
  %v1703 = vpop.f32.mrb[0].mxu0
  %v1704 = vadd.f32 %v1605, %v1703
  %v1705 = vpop.f32.mrb[0].mxu0
  %1706 = vmatprep.mubr.f32.mxu0 0.0
  %1707 = vmatmul.mubr.f32.gmra.mrb[0].mxu0 %v1527
  %v1708 = vpop.f32.mrb[0].mxu0
  %v1709 = vadd.f32 %v1605, %v1708
  %v1710 = vpop.f32.mrb[0].mxu0
  %1711 = vmatprep.mubr.f32.mxu0 0.0
  %1712 = vmatmul.mubr.f32.gmra.mrb[0].mxu0 %v1528
  %v1713 = vpop.f32.mrb[0].mxu0
  %v1714 = vadd.f32 %v1605, %v1713
  %v1715 = vpop.f32.mrb[0].mxu0
  %1716 = vmatprep.mubr.f32.mxu0 0.0
  %1717 = vmatmul.mubr.f32.gmra.mrb[0].mxu0 %v1529
  %v1718 = vpop.f32.mrb[0].mxu0
  %v1719 = vadd.f32 %v1605, %v1718
  %v1720 = vpop.f32.mrb[0].mxu0
  %1721 = vmatprep.mubr.f32.mxu0 0.0
  %1722 = vmatmul.mubr.f32.gmra.mrb[0].mxu0 %v1530
  %v1723 = vpop.f32.mrb[0].mxu0
  %v1724 = vadd.f32 %v1605, %v1723
  %v1725 = vpop.f32.mrb[0].mxu0
  %1726 = vmatprep.mubr.f32.mxu0 0.0
  %1727 = vmatmul.mubr.f32.gmra.mrb[0].mxu0 %v1531
  %v1728 = vpop.f32.mrb[0].mxu0
  %v1729 = vadd.f32 %v1605, %v1728
  %v1730 = vpop.f32.mrb[0].mxu0
  %1731 = vmatprep.mubr.f32.mxu0 0.0
  %1732 = vmatmul.mubr.f32.gmra.mrb[0].mxu0 %v1532
  %v1733 = vpop.f32.mrb[0].mxu0
  %v1734 = vadd.f32 %v1605, %v1733
  %v1735 = vpop.f32.mrb[0].mxu0
  %1736 = vmatprep.mubr.f32.mxu0 0.0
  %1737 = vmatmul.mubr.f32.gmra.mrb[0].mxu0 %v1533
  %v1738 = vpop.f32.mrb[0].mxu0
  %v1739 = vadd.f32 %v1605, %v1738
  %v1740 = vpop.f32.mrb[0].mxu0
  %1741 = vmatprep.mubr.f32.mxu0 0.0
  %1742 = vmatmul.mubr.f32.gmra.mrb[0].mxu0 %v1534
  %v1743 = vpop.f32.mrb[0].mxu0
  %v1744 = vadd.f32 %v1605, %v1743
  %v1745 = vpop.f32.mrb[0].mxu0
  %1746 = vmatprep.mubr.f32.mxu0 0.0
  %1747 = vmatmul.mubr.f32.gmra.mrb[0].mxu0 %v1535
  %v1748 = vpop.f32.mrb[0].mxu0
  %v1749 = vadd.f32 %v1605, %v1748
  %v1750 = vpop.f32.mrb[0].mxu0
  %1751 = vmatprep.mubr.f32.mxu0 0.0
  %1752 = vmatmul.mubr.f32.gmra.mrb[0].mxu0 %v1536
  %v1753 = vpop.f32.mrb[0].mxu0
  %v1754 = vadd.f32 %v1605, %v1753
  %v1755 = vpop.f32.mrb[0].mxu0
  %1756 = vmatprep.mubr.f32.mxu0 0.0
  %1757 = vmatmul.mubr.f32.gmra.mrb[0].mxu0 %v1537
  %v1758 = vpop.f32.mrb[0].mxu0
  %v1759 = vadd.f32 %v1605, %v1758
  %v1760 = vpop.f32.mrb[0].mxu0
  %1761 = vmatprep.mubr.f32.mxu0 0.0
  %1762 = vmatmul.mubr.f32.gmra.mrb[0].mxu0 %v1538
  %v1763 = vpop.f32.mrb[0].mxu0
  %v1764 = vadd.f32 %v1605, %v1763
  %v1765 = vpop.f32.mrb[0].mxu0
  %1766 = vmatprep.mubr.f32.mxu0 0.0
  %1767 = vmatmul.mubr.f32.gmra.mrb[0].mxu0 %v1539
  %v1768 = vpop.f32.mrb[0].mxu0
  %v1769 = vadd.f32 %v1605, %v1768
  %v1770 = vpop.f32.mrb[0].mxu0
  %1771 = vmatprep.mubr.f32.mxu0 0.0
  %1772 = vmatmul.mubr.f32.gmra.mrb[0].mxu0 %v1540
  %v1773 = vpop.f32.mrb[0].mxu0
  %v1774 = vadd.f32 %v1605, %v1773
  %v1775 = vpop.f32.mrb[0].mxu0
  %1776 = vmatprep.mubr.f32.mxu0 0.0
  %1777 = vmatmul.mubr.f32.gmra.mrb[0].mxu0 %v1541
  %v1778 = vpop.f32.mrb[0].mxu0
  %v1779 = vadd.f32 %v1605, %v1778
  %v1780 = vpop.f32.mrb[0].mxu0
  %1781 = vmatprep.mubr.f32.mxu0 0.0
  %1782 = vmatmul.mubr.f32.gmra.mrb[0].mxu0 %v1542
  %v1783 = vpop.f32.mrb[0].mxu0
  %v1784 = vadd.f32 %v1605, %v1783
  %v1785 = vpop.f32.mrb[0].mxu0
  %1786 = vmatprep.mubr.f32.mxu0 0.0
  %1787 = vmatmul.mubr.f32.gmra.mrb[0].mxu0 %v1543
  %v1788 = vpop.f32.mrb[0].mxu0
  %v1789 = vadd.f32 %v1605, %v1788
  %v1790 = vpop.f32.mrb[0].mxu0
  %1791 = vmatprep.mubr.f32.mxu0 0.0
  %1792 = vmatmul.mubr.f32.gmra.mrb[0].mxu0 %v1544
  %v1793 = vpop.f32.mrb[0].mxu0
  %v1794 = vadd.f32 %v1605, %v1793
  %v1795 = vpop.f32.mrb[0].mxu0
  %1796 = vmatprep.mubr.f32.mxu0 0.0
  %1797 = vmatmul.mubr.f32.gmra.mrb[0].mxu0 %v1545
  %v1798 = vpop.f32.mrb[0].mxu0
  %v1799 = vadd.f32 %v1605, %v1798
  %v1800 = vpop.f32.mrb[0].mxu0
  %1801 = vmatprep.mubr.f32.mxu0 0.0
  %1802 = vmatmul.mubr.f32.gmra.mrb[0].mxu0 %v1546
  %v1803 = vpop.f32.mrb[0].mxu0
  %v1804 = vadd.f32 %v1605, %v1803
  %v1805 = vpop.f32.mrb[0].mxu0
  %1806 = vmatprep.mubr.f32.mxu0 0.0
  %1807 = vmatmul.mubr.f32.gmra.mrb[0].mxu0 %v1547
  %v1808 = vpop.f32.mrb[0].mxu0
  %v1809 = vadd.f32 %v1605, %v1808
  %v1810 = vpop.f32.mrb[0].mxu0
  %1811 = vmatprep.mubr.f32.mxu0 0.0
  %1812 = vmatmul.mubr.f32.gmra.mrb[0].mxu0 %v1548
  %v1813 = vpop.f32.mrb[0].mxu0
  %v1814 = vadd.f32 %v1605, %v1813
  %v1815 = vpop.f32.mrb[0].mxu0
  %1816 = vmatprep.mubr.f32.mxu0 0.0
  %1817 = vmatmul.mubr.f32.gmra.mrb[0].mxu0 %v1549
  %v1818 = vpop.f32.mrb[0].mxu0
  %v1819 = vadd.f32 %v1605, %v1818
  %v1820 = vpop.f32.mrb[0].mxu0
  %1821 = vmatprep.mubr.f32.mxu0 0.0
  %1822 = vmatmul.mubr.f32.gmra.mrb[0].mxu0 %v1550
  %v1823 = vpop.f32.mrb[0].mxu0
  %v1824 = vadd.f32 %v1605, %v1823
  %v1825 = vpop.f32.mrb[0].mxu0
  %1826 = vmatprep.mubr.f32.mxu0 0.0
  %1827 = vmatmul.mubr.f32.gmra.mrb[0].mxu0 %v1551
  %v1828 = vpop.f32.mrb[0].mxu0
  %v1829 = vadd.f32 %v1605, %v1828
  %v1830 = vpop.f32.mrb[0].mxu0
  %1831 = vmatprep.mubr.f32.mxu0 0.0
  %1832 = vmatmul.mubr.f32.gmra.mrb[0].mxu0 %v1552
  %v1833 = vpop.f32.mrb[0].mxu0
  %v1834 = vadd.f32 %v1605, %v1833
  %v1835 = vpop.f32.mrb[0].mxu0
  %1836 = vmatprep.mubr.f32.mxu0 0.0
  %1837 = vmatmul.mubr.f32.gmra.mrb[0].mxu0 %v1553
  %v1838 = vpop.f32.mrb[0].mxu0
  %v1839 = vadd.f32 %v1605, %v1838
  %v1840 = vpop.f32.mrb[0].mxu0
  %1841 = vmatprep.mubr.f32.mxu0 0.0
  %1842 = vmatmul.mubr.f32.gmra.mrb[0].mxu0 %v1554
  %v1843 = vpop.f32.mrb[0].mxu0
  %v1844 = vadd.f32 %v1605, %v1843
  %v1845 = vpop.f32.mrb[0].mxu0
  %1846 = vmatprep.mubr.f32.mxu0 0.0
  %1847 = vmatmul.mubr.f32.gmra.mrb[0].mxu0 %v1555
  %v1848 = vpop.f32.mrb[0].mxu0
  %v1849 = vadd.f32 %v1605, %v1848
  %v1850 = vpop.f32.mrb[0].mxu0
  %1851 = vmatprep.mubr.f32.mxu0 0.0
  %1852 = vmatmul.mubr.f32.gmra.mrb[0].mxu0 %v1556
  %v1853 = vpop.f32.mrb[0].mxu0
  %v1854 = vadd.f32 %v1605, %v1853
  %v1855 = vpop.f32.mrb[0].mxu0
  %1856 = vmatprep.mubr.f32.mxu0 0.0
  %1857 = vmatmul.mubr.f32.gmra.mrb[0].mxu0 %v1557
  %v1858 = vpop.f32.mrb[0].mxu0
  %v1859 = vadd.f32 %v1605, %v1858
  %v1860 = vpop.f32.mrb[0].mxu0
  %1861 = vmatprep.mubr.f32.mxu0 0.0
  %1862 = vmatmul.mubr.f32.gmra.mrb[0].mxu0 %v1558
  %v1863 = vpop.f32.mrb[0].mxu0
  %v1864 = vadd.f32 %v1605, %v1863
  %v1865 = vpop.f32.mrb[0].mxu0
  %1866 = vmatprep.mubr.f32.mxu0 0.0
  %1867 = vmatmul.mubr.f32.gmra.mrb[0].mxu0 %v1559
  %v1868 = vpop.f32.mrb[0].mxu0
  %v1869 = vadd.f32 %v1605, %v1868
  %v1870 = vpop.f32.mrb[0].mxu0
  %1871 = vmatprep.mubr.f32.mxu0 0.0
  %1872 = vmatmul.mubr.f32.gmra.mrb[0].mxu0 %v1560
  %v1873 = vpop.f32.mrb[0].mxu0
  %v1874 = vadd.f32 %v1605, %v1873
  %v1875 = vpop.f32.mrb[0].mxu0
  %1876 = vmatprep.mubr.f32.mxu0 0.0
  %1877 = vmatmul.mubr.f32.gmra.mrb[0].mxu0 %v1561
  %v1878 = vpop.f32.mrb[0].mxu0
  %v1879 = vadd.f32 %v1605, %v1878
  %v1880 = vpop.f32.mrb[0].mxu0
  %1881 = vmatprep.mubr.f32.mxu0 0.0
  %1882 = vmatmul.mubr.f32.gmra.mrb[0].mxu0 %v1562
  %v1883 = vpop.f32.mrb[0].mxu0
  %v1884 = vadd.f32 %v1605, %v1883
  %v1885 = vpop.f32.mrb[0].mxu0
  %1886 = vmatprep.mubr.f32.mxu0 0.0
  %1887 = vmatmul.mubr.f32.gmra.mrb[0].mxu0 %v1563
  %v1888 = vpop.f32.mrb[0].mxu0
  %v1889 = vadd.f32 %v1605, %v1888
  %v1890 = vpop.f32.mrb[0].mxu0
  %1891 = vmatprep.mubr.f32.mxu0 0.0
  %1892 = vmatmul.mubr.f32.gmra.mrb[0].mxu0 %v1564
  %v1893 = vpop.f32.mrb[0].mxu0
  %v1894 = vadd.f32 %v1605, %v1893
  %v1895 = vpop.f32.mrb[0].mxu0
  %1896 = vmatprep.mubr.f32.mxu0 0.0
  %1897 = vmatmul.mubr.f32.gmra.mrb[0].mxu0 %v1565
  %v1898 = vpop.f32.mrb[0].mxu0
  %v1899 = vadd.f32 %v1605, %v1898
  %v1900 = vpop.f32.mrb[0].mxu0
  %1901 = vmatprep.mubr.f32.mxu0 0.0
  %1902 = vmatmul.mubr.f32.gmra.mrb[0].mxu0 %v1566
  %v1903 = vpop.f32.mrb[0].mxu0
  %v1904 = vadd.f32 %v1605, %v1903
  %v1905 = vpop.f32.mrb[0].mxu0
  %1906 = vmatprep.mubr.f32.mxu0 0.0
  %1907 = vmatmul.mubr.f32.gmra.mrb[0].mxu0 %v1567
  %v1908 = vpop.f32.mrb[0].mxu0
  %v1909 = vadd.f32 %v1605, %v1908
  %v1910 = vpop.f32.mrb[0].mxu0
  %1911 = vmatprep.mubr.f32.mxu0 0.0
  %1912 = vmatmul.mubr.f32.gmra.mrb[0].mxu0 %v1568
  %v1913 = vpop.f32.mrb[0].mxu0
  %v1914 = vadd.f32 %v1605, %v1913
  %v1915 = vpop.f32.mrb[0].mxu0
  %1916 = vmatprep.mubr.f32.mxu0 0.0
  %1917 = vmatmul.mubr.f32.gmra.mrb[0].mxu0 %v1569
  %v1918 = vpop.f32.mrb[0].mxu0
  %v1919 = vadd.f32 %v1605, %v1918
  %v1920 = vpop.f32.mrb[0].mxu0
  %1921 = vmatprep.mubr.f32.mxu0 0.0
  %1922 = vmatmul.mubr.f32.gmra.mrb[0].mxu0 %v1570
  %v1923 = vpop.f32.mrb[0].mxu0
  %v1924 = vadd.f32 %v1605, %v1923
  %v1925 = vpop.f32.mrb[0].mxu0
  %1926 = vmatprep.mubr.f32.mxu0 0.0
  %1927 = vmatmul.mubr.f32.gmra.mrb[0].mxu0 %v1571
  %v1928 = vpop.f32.mrb[0].mxu0
  %v1929 = vadd.f32 %v1605, %v1928
  %v1930 = vpop.f32.mrb[0].mxu0
  %1931 = vmatprep.mubr.f32.mxu0 0.0
  %1932 = vmatmul.mubr.f32.gmra.mrb[0].mxu0 %v1572
  %v1933 = vpop.f32.mrb[0].mxu0
  %v1934 = vadd.f32 %v1605, %v1933
  %v1935 = vpop.f32.mrb[0].mxu0
  %1936 = vmatprep.mubr.f32.mxu0 0.0
  %1937 = vmatmul.mubr.f32.gmra.mrb[0].mxu0 %v1573
  %v1938 = vpop.f32.mrb[0].mxu0
  %v1939 = vadd.f32 %v1605, %v1938
  %v1940 = vpop.f32.mrb[0].mxu0
  %1941 = vmatprep.mubr.f32.mxu0 0.0
  %1942 = vmatmul.mubr.f32.gmra.mrb[0].mxu0 %v1574
  %v1943 = vpop.f32.mrb[0].mxu0
  %v1944 = vadd.f32 %v1605, %v1943
  %v1945 = vpop.f32.mrb[0].mxu0
  %1946 = vmatprep.mubr.f32.mxu0 0.0
  %1947 = vmatmul.mubr.f32.gmra.mrb[0].mxu0 %v1575
  %v1948 = vpop.f32.mrb[0].mxu0
  %v1949 = vadd.f32 %v1605, %v1948
  %v1950 = vpop.f32.mrb[0].mxu0
  %1951 = vmatprep.mubr.f32.mxu0 0.0
  %1952 = vmatmul.mubr.f32.gmra.mrb[0].mxu0 %v1576
  %v1953 = vpop.f32.mrb[0].mxu0
  %v1954 = vadd.f32 %v1605, %v1953
  %v1955 = vpop.f32.mrb[0].mxu0
  %1956 = vmatprep.mubr.f32.mxu0 0.0
  %1957 = vmatmul.mubr.f32.gmra.mrb[0].mxu0 %v1577
  %v1958 = vpop.f32.mrb[0].mxu0
  %v1959 = vadd.f32 %v1605, %v1958
  %v1960 = vpop.f32.mrb[0].mxu0
  %1961 = vmatprep.mubr.f32.mxu0 0.0
  %1962 = vmatmul.mubr.f32.gmra.mrb[0].mxu0 %v1578
  %v1963 = vpop.f32.mrb[0].mxu0
  %v1964 = vadd.f32 %v1605, %v1963
  %v1965 = vpop.f32.mrb[0].mxu0
  %1966 = vmatprep.mubr.f32.mxu0 0.0
  %1967 = vmatmul.mubr.f32.gmra.mrb[0].mxu0 %v1579
  %v1968 = vpop.f32.mrb[0].mxu0
  %v1969 = vadd.f32 %v1605, %v1968
  %v1970 = vpop.f32.mrb[0].mxu0
  %1971 = vmatprep.mubr.f32.mxu0 0.0
  %1972 = vmatmul.mubr.f32.gmra.mrb[0].mxu0 %v1580
  %v1973 = vpop.f32.mrb[0].mxu0
  %v1974 = vadd.f32 %v1605, %v1973
  %v1975 = vpop.f32.mrb[0].mxu0
  %1976 = vmatprep.mubr.f32.mxu0 0.0
  %1977 = vmatmul.mubr.f32.gmra.mrb[0].mxu0 %v1581
  %v1978 = vpop.f32.mrb[0].mxu0
  %v1979 = vadd.f32 %v1605, %v1978
  %v1980 = vpop.f32.mrb[0].mxu0
  %1981 = vmatprep.mubr.f32.mxu0 0.0
  %1982 = vmatmul.mubr.f32.gmra.mrb[0].mxu0 %v1582
  %v1983 = vpop.f32.mrb[0].mxu0
  %v1984 = vadd.f32 %v1605, %v1983
  %v1985 = vpop.f32.mrb[0].mxu0
  %1986 = vmatprep.mubr.f32.mxu0 0.0
  %1987 = vmatmul.mubr.f32.gmra.mrb[0].mxu0 %v1583
  %v1988 = vpop.f32.mrb[0].mxu0
  %v1989 = vadd.f32 %v1605, %v1988
  %v1990 = vpop.f32.mrb[0].mxu0
  %1991 = vdwg.mxu0
  %vm1992 = vcmp.gt.f32.partialorder %v1674, 0.0
  %vm1993 = vcmp.gt.f32.partialorder %v1679, 0.0
  %vm1994 = vcmp.gt.f32.partialorder %v1684, 0.0
  %vm1995 = vcmp.gt.f32.partialorder %v1689, 0.0
  %vm1996 = vcmp.gt.f32.partialorder %v1694, 0.0
  %vm1997 = vcmp.gt.f32.partialorder %v1699, 0.0
  %vm1998 = vcmp.gt.f32.partialorder %v1704, 0.0
  %vm1999 = vcmp.gt.f32.partialorder %v1709, 0.0
  %vm2000 = vcmp.gt.f32.partialorder %v1714, 0.0
  %vm2001 = vcmp.gt.f32.partialorder %v1719, 0.0
  %vm2002 = vcmp.gt.f32.partialorder %v1724, 0.0
  %vm2003 = vcmp.gt.f32.partialorder %v1729, 0.0
  %vm2004 = vcmp.gt.f32.partialorder %v1734, 0.0
  %vm2005 = vcmp.gt.f32.partialorder %v1739, 0.0
  %vm2006 = vcmp.gt.f32.partialorder %v1744, 0.0
  %vm2007 = vcmp.gt.f32.partialorder %v1749, 0.0
  %vm2008 = vcmp.gt.f32.partialorder %v1754, 0.0
  %vm2009 = vcmp.gt.f32.partialorder %v1759, 0.0
  %vm2010 = vcmp.gt.f32.partialorder %v1764, 0.0
  %vm2011 = vcmp.gt.f32.partialorder %v1769, 0.0
  %vm2012 = vcmp.gt.f32.partialorder %v1774, 0.0
  %vm2013 = vcmp.gt.f32.partialorder %v1779, 0.0
  %vm2014 = vcmp.gt.f32.partialorder %v1784, 0.0
  %vm2015 = vcmp.gt.f32.partialorder %v1789, 0.0
  %vm2016 = vcmp.gt.f32.partialorder %v1794, 0.0
  %vm2017 = vcmp.gt.f32.partialorder %v1799, 0.0
  %vm2018 = vcmp.gt.f32.partialorder %v1804, 0.0
  %vm2019 = vcmp.gt.f32.partialorder %v1809, 0.0
  %vm2020 = vcmp.gt.f32.partialorder %v1814, 0.0
  %vm2021 = vcmp.gt.f32.partialorder %v1819, 0.0
  %vm2022 = vcmp.gt.f32.partialorder %v1824, 0.0
  %vm2023 = vcmp.gt.f32.partialorder %v1829, 0.0
  %vm2024 = vcmp.gt.f32.partialorder %v1834, 0.0
  %vm2025 = vcmp.gt.f32.partialorder %v1839, 0.0
  %vm2026 = vcmp.gt.f32.partialorder %v1844, 0.0
  %vm2027 = vcmp.gt.f32.partialorder %v1849, 0.0
  %vm2028 = vcmp.gt.f32.partialorder %v1854, 0.0
  %vm2029 = vcmp.gt.f32.partialorder %v1859, 0.0
  %vm2030 = vcmp.gt.f32.partialorder %v1864, 0.0
  %vm2031 = vcmp.gt.f32.partialorder %v1869, 0.0
  %vm2032 = vcmp.gt.f32.partialorder %v1874, 0.0
  %vm2033 = vcmp.gt.f32.partialorder %v1879, 0.0
  %vm2034 = vcmp.gt.f32.partialorder %v1884, 0.0
  %vm2035 = vcmp.gt.f32.partialorder %v1889, 0.0
  %vm2036 = vcmp.gt.f32.partialorder %v1894, 0.0
  %vm2037 = vcmp.gt.f32.partialorder %v1899, 0.0
  %vm2038 = vcmp.gt.f32.partialorder %v1904, 0.0
  %vm2039 = vcmp.gt.f32.partialorder %v1909, 0.0
  %vm2040 = vcmp.gt.f32.partialorder %v1914, 0.0
  %vm2041 = vcmp.gt.f32.partialorder %v1919, 0.0
  %vm2042 = vcmp.gt.f32.partialorder %v1924, 0.0
  %vm2043 = vcmp.gt.f32.partialorder %v1929, 0.0
  %vm2044 = vcmp.gt.f32.partialorder %v1934, 0.0
  %vm2045 = vcmp.gt.f32.partialorder %v1939, 0.0
  %vm2046 = vcmp.gt.f32.partialorder %v1944, 0.0
  %vm2047 = vcmp.gt.f32.partialorder %v1949, 0.0
  %vm2048 = vcmp.gt.f32.partialorder %v1954, 0.0
  %vm2049 = vcmp.gt.f32.partialorder %v1959, 0.0
  %vm2050 = vcmp.gt.f32.partialorder %v1964, 0.0
  %vm2051 = vcmp.gt.f32.partialorder %v1969, 0.0
  %vm2052 = vcmp.gt.f32.partialorder %v1974, 0.0
  %vm2053 = vcmp.gt.f32.partialorder %v1979, 0.0
  %vm2054 = vcmp.gt.f32.partialorder %v1984, 0.0
  %vm2055 = vcmp.gt.f32.partialorder %v1989, 0.0
  %v2056 = vmul.f32 %v1674, 0.01
  %v2057 = vmul.f32 %v1679, 0.01
  %v2058 = vmul.f32 %v1684, 0.01
  %v2059 = vmul.f32 %v1689, 0.01
  %v2060 = vmul.f32 %v1694, 0.01
  %v2061 = vmul.f32 %v1699, 0.01
  %v2062 = vmul.f32 %v1704, 0.01
  %v2063 = vmul.f32 %v1709, 0.01
  %v2064 = vmul.f32 %v1714, 0.01
  %v2065 = vmul.f32 %v1719, 0.01
  %v2066 = vmul.f32 %v1724, 0.01
  %v2067 = vmul.f32 %v1729, 0.01
  %v2068 = vmul.f32 %v1734, 0.01
  %v2069 = vmul.f32 %v1739, 0.01
  %v2070 = vmul.f32 %v1744, 0.01
  %v2071 = vmul.f32 %v1749, 0.01
  %v2072 = vmul.f32 %v1754, 0.01
  %v2073 = vmul.f32 %v1759, 0.01
  %v2074 = vmul.f32 %v1764, 0.01
  %v2075 = vmul.f32 %v1769, 0.01
  %v2076 = vmul.f32 %v1774, 0.01
  %v2077 = vmul.f32 %v1779, 0.01
  %v2078 = vmul.f32 %v1784, 0.01
  %v2079 = vmul.f32 %v1789, 0.01
  %v2080 = vmul.f32 %v1794, 0.01
  %v2081 = vmul.f32 %v1799, 0.01
  %v2082 = vmul.f32 %v1804, 0.01
  %v2083 = vmul.f32 %v1809, 0.01
  %v2084 = vmul.f32 %v1814, 0.01
  %v2085 = vmul.f32 %v1819, 0.01
  %v2086 = vmul.f32 %v1824, 0.01
  %v2087 = vmul.f32 %v1829, 0.01
  %v2088 = vmul.f32 %v1834, 0.01
  %v2089 = vmul.f32 %v1839, 0.01
  %v2090 = vmul.f32 %v1844, 0.01
  %v2091 = vmul.f32 %v1849, 0.01
  %v2092 = vmul.f32 %v1854, 0.01
  %v2093 = vmul.f32 %v1859, 0.01
  %v2094 = vmul.f32 %v1864, 0.01
  %v2095 = vmul.f32 %v1869, 0.01
  %v2096 = vmul.f32 %v1874, 0.01
  %v2097 = vmul.f32 %v1879, 0.01
  %v2098 = vmul.f32 %v1884, 0.01
  %v2099 = vmul.f32 %v1889, 0.01
  %v2100 = vmul.f32 %v1894, 0.01
  %v2101 = vmul.f32 %v1899, 0.01
  %v2102 = vmul.f32 %v1904, 0.01
  %v2103 = vmul.f32 %v1909, 0.01
  %v2104 = vmul.f32 %v1914, 0.01
  %v2105 = vmul.f32 %v1919, 0.01
  %v2106 = vmul.f32 %v1924, 0.01
  %v2107 = vmul.f32 %v1929, 0.01
  %v2108 = vmul.f32 %v1934, 0.01
  %v2109 = vmul.f32 %v1939, 0.01
  %v2110 = vmul.f32 %v1944, 0.01
  %v2111 = vmul.f32 %v1949, 0.01
  %v2112 = vmul.f32 %v1954, 0.01
  %v2113 = vmul.f32 %v1959, 0.01
  %v2114 = vmul.f32 %v1964, 0.01
  %v2115 = vmul.f32 %v1969, 0.01
  %v2116 = vmul.f32 %v1974, 0.01
  %v2117 = vmul.f32 %v1979, 0.01
  %v2118 = vmul.f32 %v1984, 0.01
  %v2119 = vmul.f32 %v1989, 0.01
  %v2120 = vsel %vm1992, %v1674, %v2056
  %v2121 = vsel %vm1993, %v1679, %v2057
  %v2122 = vsel %vm1994, %v1684, %v2058
  %v2123 = vsel %vm1995, %v1689, %v2059
  %v2124 = vsel %vm1996, %v1694, %v2060
  %v2125 = vsel %vm1997, %v1699, %v2061
  %v2126 = vsel %vm1998, %v1704, %v2062
  %v2127 = vsel %vm1999, %v1709, %v2063
  %v2128 = vsel %vm2000, %v1714, %v2064
  %v2129 = vsel %vm2001, %v1719, %v2065
  %v2130 = vsel %vm2002, %v1724, %v2066
  %v2131 = vsel %vm2003, %v1729, %v2067
  %v2132 = vsel %vm2004, %v1734, %v2068
  %v2133 = vsel %vm2005, %v1739, %v2069
  %v2134 = vsel %vm2006, %v1744, %v2070
  %v2135 = vsel %vm2007, %v1749, %v2071
  %v2136 = vsel %vm2008, %v1754, %v2072
  %v2137 = vsel %vm2009, %v1759, %v2073
  %v2138 = vsel %vm2010, %v1764, %v2074
  %v2139 = vsel %vm2011, %v1769, %v2075
  %v2140 = vsel %vm2012, %v1774, %v2076
  %v2141 = vsel %vm2013, %v1779, %v2077
  %v2142 = vsel %vm2014, %v1784, %v2078
  %v2143 = vsel %vm2015, %v1789, %v2079
  %v2144 = vsel %vm2016, %v1794, %v2080
  %v2145 = vsel %vm2017, %v1799, %v2081
  %v2146 = vsel %vm2018, %v1804, %v2082
  %v2147 = vsel %vm2019, %v1809, %v2083
  %v2148 = vsel %vm2020, %v1814, %v2084
  %v2149 = vsel %vm2021, %v1819, %v2085
  %v2150 = vsel %vm2022, %v1824, %v2086
  %v2151 = vsel %vm2023, %v1829, %v2087
  %v2152 = vsel %vm2024, %v1834, %v2088
  %v2153 = vsel %vm2025, %v1839, %v2089
  %v2154 = vsel %vm2026, %v1844, %v2090
  %v2155 = vsel %vm2027, %v1849, %v2091
  %v2156 = vsel %vm2028, %v1854, %v2092
  %v2157 = vsel %vm2029, %v1859, %v2093
  %v2158 = vsel %vm2030, %v1864, %v2094
  %v2159 = vsel %vm2031, %v1869, %v2095
  %v2160 = vsel %vm2032, %v1874, %v2096
  %v2161 = vsel %vm2033, %v1879, %v2097
  %v2162 = vsel %vm2034, %v1884, %v2098
  %v2163 = vsel %vm2035, %v1889, %v2099
  %v2164 = vsel %vm2036, %v1894, %v2100
  %v2165 = vsel %vm2037, %v1899, %v2101
  %v2166 = vsel %vm2038, %v1904, %v2102
  %v2167 = vsel %vm2039, %v1909, %v2103
  %v2168 = vsel %vm2040, %v1914, %v2104
  %v2169 = vsel %vm2041, %v1919, %v2105
  %v2170 = vsel %vm2042, %v1924, %v2106
  %v2171 = vsel %vm2043, %v1929, %v2107
  %v2172 = vsel %vm2044, %v1934, %v2108
  %v2173 = vsel %vm2045, %v1939, %v2109
  %v2174 = vsel %vm2046, %v1944, %v2110
  %v2175 = vsel %vm2047, %v1949, %v2111
  %v2176 = vsel %vm2048, %v1954, %v2112
  %v2177 = vsel %vm2049, %v1959, %v2113
  %v2178 = vsel %vm2050, %v1964, %v2114
  %v2179 = vsel %vm2051, %v1969, %v2115
  %v2180 = vsel %vm2052, %v1974, %v2116
  %v2181 = vsel %vm2053, %v1979, %v2117
  %v2182 = vsel %vm2054, %v1984, %v2118
  %v2183 = vsel %vm2055, %v1989, %v2119
  %v2184 = vld [vmem:[%s7] sm:$0xff]
  %v2185 = vld [vmem:[%s8] sm:$0xff]
  %2187 = vset.pattern.permute.xlu0 0
  %2188 = vperm.xlu0 %2187, %v2185
  %v2189 = vpop.permute.xlu0 %2188
  %v2192 = vsel %vm165, %v2184, 0
  %v2195 = vsel %vm165, %v2120, 0
  %v2198 = vsel %vm165, %v2121, 0
  %v2201 = vsel %vm165, %v2122, 0
  %v2204 = vsel %vm165, %v2123, 0
  %v2207 = vsel %vm165, %v2124, 0
  %v2210 = vsel %vm165, %v2125, 0
  %v2213 = vsel %vm165, %v2126, 0
  %v2216 = vsel %vm165, %v2127, 0
  %v2219 = vsel %vm165, %v2128, 0
  %v2222 = vsel %vm165, %v2129, 0
  %v2225 = vsel %vm165, %v2130, 0
  %v2228 = vsel %vm165, %v2131, 0
  %v2231 = vsel %vm165, %v2132, 0
  %v2234 = vsel %vm165, %v2133, 0
  %v2237 = vsel %vm165, %v2134, 0
  %v2240 = vsel %vm165, %v2135, 0
  %v2243 = vsel %vm165, %v2136, 0
  %v2246 = vsel %vm165, %v2137, 0
  %v2249 = vsel %vm165, %v2138, 0
  %v2252 = vsel %vm165, %v2139, 0
  %v2255 = vsel %vm165, %v2140, 0
  %v2258 = vsel %vm165, %v2141, 0
  %v2261 = vsel %vm165, %v2142, 0
  %v2264 = vsel %vm165, %v2143, 0
  %v2267 = vsel %vm165, %v2144, 0
  %v2270 = vsel %vm165, %v2145, 0
  %v2273 = vsel %vm165, %v2146, 0
  %v2276 = vsel %vm165, %v2147, 0
  %v2279 = vsel %vm165, %v2148, 0
  %v2282 = vsel %vm165, %v2149, 0
  %v2285 = vsel %vm165, %v2150, 0
  %v2288 = vsel %vm165, %v2151, 0
  %v2291 = vsel %vm165, %v2152, 0
  %v2294 = vsel %vm165, %v2153, 0
  %v2297 = vsel %vm165, %v2154, 0
  %v2300 = vsel %vm165, %v2155, 0
  %v2303 = vsel %vm165, %v2156, 0
  %v2306 = vsel %vm165, %v2157, 0
  %v2309 = vsel %vm165, %v2158, 0
  %v2312 = vsel %vm165, %v2159, 0
  %v2315 = vsel %vm165, %v2160, 0
  %v2318 = vsel %vm165, %v2161, 0
  %v2321 = vsel %vm165, %v2162, 0
  %v2324 = vsel %vm165, %v2163, 0
  %v2327 = vsel %vm165, %v2164, 0
  %v2330 = vsel %vm165, %v2165, 0
  %v2333 = vsel %vm165, %v2166, 0
  %v2336 = vsel %vm165, %v2167, 0
  %v2339 = vsel %vm165, %v2168, 0
  %v2342 = vsel %vm165, %v2169, 0
  %v2345 = vsel %vm165, %v2170, 0
  %v2348 = vsel %vm165, %v2171, 0
  %v2351 = vsel %vm165, %v2172, 0
  %v2354 = vsel %vm165, %v2173, 0
  %v2357 = vsel %vm165, %v2174, 0
  %v2360 = vsel %vm165, %v2175, 0
  %v2363 = vsel %vm165, %v2176, 0
  %v2366 = vsel %vm165, %v2177, 0
  %v2369 = vsel %vm165, %v2178, 0
  %v2372 = vsel %vm165, %v2179, 0
  %v2375 = vsel %vm165, %v2180, 0
  %v2378 = vsel %vm165, %v2181, 0
  %v2381 = vsel %vm165, %v2182, 0
  %v2384 = vsel %vm165, %v2183, 0
  %2386 = vmatprep.subr.mxu0 0.0
  %2387 = vmatpush1.xpose.msra.mxu0 %v2195
  %2388 = vmatprep.subr.mxu0 0.0
  %2389 = vmatpush1.xpose.msra.mxu0 %v2198
  %2390 = vmatprep.subr.mxu0 0.0
  %2391 = vmatpush1.xpose.msra.mxu0 %v2201
  %2392 = vmatprep.subr.mxu0 0.0
  %2393 = vmatpush1.xpose.msra.mxu0 %v2204
  %2394 = vmatprep.subr.mxu0 0.0
  %2395 = vmatpush1.xpose.msra.mxu0 %v2207
  %2396 = vmatprep.subr.mxu0 0.0
  %2397 = vmatpush1.xpose.msra.mxu0 %v2210
  %2398 = vmatprep.subr.mxu0 0.0
  %2399 = vmatpush1.xpose.msra.mxu0 %v2213
  %2400 = vmatprep.subr.mxu0 0.0
  %2401 = vmatpush1.xpose.msra.mxu0 %v2216
  %2402 = vmatprep.subr.mxu0 0.0
  %2403 = vmatpush1.xpose.msra.mxu0 %v2219
  %2404 = vmatprep.subr.mxu0 0.0
  %2405 = vmatpush1.xpose.msra.mxu0 %v2222
  %2406 = vmatprep.subr.mxu0 0.0
  %2407 = vmatpush1.xpose.msra.mxu0 %v2225
  %2408 = vmatprep.subr.mxu0 0.0
  %2409 = vmatpush1.xpose.msra.mxu0 %v2228
  %2410 = vmatprep.subr.mxu0 0.0
  %2411 = vmatpush1.xpose.msra.mxu0 %v2231
  %2412 = vmatprep.subr.mxu0 0.0
  %2413 = vmatpush1.xpose.msra.mxu0 %v2234
  %2414 = vmatprep.subr.mxu0 0.0
  %2415 = vmatpush1.xpose.msra.mxu0 %v2237
  %2416 = vmatprep.subr.mxu0 0.0
  %2417 = vmatpush1.xpose.msra.mxu0 %v2240
  %2418 = vmatprep.subr.mxu0 0.0
  %2419 = vmatpush1.xpose.msra.mxu0 %v2243
  %2420 = vmatprep.subr.mxu0 0.0
  %2421 = vmatpush1.xpose.msra.mxu0 %v2246
  %2422 = vmatprep.subr.mxu0 0.0
  %2423 = vmatpush1.xpose.msra.mxu0 %v2249
  %2424 = vmatprep.subr.mxu0 0.0
  %2425 = vmatpush1.xpose.msra.mxu0 %v2252
  %2426 = vmatprep.subr.mxu0 0.0
  %2427 = vmatpush1.xpose.msra.mxu0 %v2255
  %2428 = vmatprep.subr.mxu0 0.0
  %2429 = vmatpush1.xpose.msra.mxu0 %v2258
  %2430 = vmatprep.subr.mxu0 0.0
  %2431 = vmatpush1.xpose.msra.mxu0 %v2261
  %2432 = vmatprep.subr.mxu0 0.0
  %2433 = vmatpush1.xpose.msra.mxu0 %v2264
  %2434 = vmatprep.subr.mxu0 0.0
  %2435 = vmatpush1.xpose.msra.mxu0 %v2267
  %2436 = vmatprep.subr.mxu0 0.0
  %2437 = vmatpush1.xpose.msra.mxu0 %v2270
  %2438 = vmatprep.subr.mxu0 0.0
  %2439 = vmatpush1.xpose.msra.mxu0 %v2273
  %2440 = vmatprep.subr.mxu0 0.0
  %2441 = vmatpush1.xpose.msra.mxu0 %v2276
  %2442 = vmatprep.subr.mxu0 0.0
  %2443 = vmatpush1.xpose.msra.mxu0 %v2279
  %2444 = vmatprep.subr.mxu0 0.0
  %2445 = vmatpush1.xpose.msra.mxu0 %v2282
  %2446 = vmatprep.subr.mxu0 0.0
  %2447 = vmatpush1.xpose.msra.mxu0 %v2285
  %2448 = vmatprep.subr.mxu0 0.0
  %2449 = vmatpush1.xpose.msra.mxu0 %v2288
  %2450 = vmatprep.mubr.f32.mxu0 0.0
  %2451 = vmatmul.mubr.f32.gmra.mrb[0].mxu0 %v2192
  %v2452 = vpop.f32.mrb[0].mxu0
  %v2453 = vadd.f32 %v2189, %v2452
  %v2454 = vpop.f32.mrb[0].mxu0
  %v2455 = vadd.f32 %v2189, %v2454
  %2456 = vdwg.mxu0
  %2457 = vmatprep.subr.mxu0 0.0
  %2458 = vmatpush1.xpose.msra.mxu0 %v2291
  %2459 = vmatprep.subr.mxu0 0.0
  %2460 = vmatpush1.xpose.msra.mxu0 %v2294
  %2461 = vmatprep.subr.mxu0 0.0
  %2462 = vmatpush1.xpose.msra.mxu0 %v2297
  %2463 = vmatprep.subr.mxu0 0.0
  %2464 = vmatpush1.xpose.msra.mxu0 %v2300
  %2465 = vmatprep.subr.mxu0 0.0
  %2466 = vmatpush1.xpose.msra.mxu0 %v2303
  %2467 = vmatprep.subr.mxu0 0.0
  %2468 = vmatpush1.xpose.msra.mxu0 %v2306
  %2469 = vmatprep.subr.mxu0 0.0
  %2470 = vmatpush1.xpose.msra.mxu0 %v2309
  %2471 = vmatprep.subr.mxu0 0.0
  %2472 = vmatpush1.xpose.msra.mxu0 %v2312
  %2473 = vmatprep.subr.mxu0 0.0
  %2474 = vmatpush1.xpose.msra.mxu0 %v2315
  %2475 = vmatprep.subr.mxu0 0.0
  %2476 = vmatpush1.xpose.msra.mxu0 %v2318
  %2477 = vmatprep.subr.mxu0 0.0
  %2478 = vmatpush1.xpose.msra.mxu0 %v2321
  %2479 = vmatprep.subr.mxu0 0.0
  %2480 = vmatpush1.xpose.msra.mxu0 %v2324
  %2481 = vmatprep.subr.mxu0 0.0
  %2482 = vmatpush1.xpose.msra.mxu0 %v2327
  %2483 = vmatprep.subr.mxu0 0.0
  %2484 = vmatpush1.xpose.msra.mxu0 %v2330
  %2485 = vmatprep.subr.mxu0 0.0
  %2486 = vmatpush1.xpose.msra.mxu0 %v2333
  %2487 = vmatprep.subr.mxu0 0.0
  %2488 = vmatpush1.xpose.msra.mxu0 %v2336
  %2489 = vmatprep.subr.mxu0 0.0
  %2490 = vmatpush1.xpose.msra.mxu0 %v2339
  %2491 = vmatprep.subr.mxu0 0.0
  %2492 = vmatpush1.xpose.msra.mxu0 %v2342
  %2493 = vmatprep.subr.mxu0 0.0
  %2494 = vmatpush1.xpose.msra.mxu0 %v2345
  %2495 = vmatprep.subr.mxu0 0.0
  %2496 = vmatpush1.xpose.msra.mxu0 %v2348
  %2497 = vmatprep.subr.mxu0 0.0
  %2498 = vmatpush1.xpose.msra.mxu0 %v2351
  %2499 = vmatprep.subr.mxu0 0.0
  %2500 = vmatpush1.xpose.msra.mxu0 %v2354
  %2501 = vmatprep.subr.mxu0 0.0
  %2502 = vmatpush1.xpose.msra.mxu0 %v2357
  %2503 = vmatprep.subr.mxu0 0.0
  %2504 = vmatpush1.xpose.msra.mxu0 %v2360
  %2505 = vmatprep.subr.mxu0 0.0
  %2506 = vmatpush1.xpose.msra.mxu0 %v2363
  %2507 = vmatprep.subr.mxu0 0.0
  %2508 = vmatpush1.xpose.msra.mxu0 %v2366
  %2509 = vmatprep.subr.mxu0 0.0
  %2510 = vmatpush1.xpose.msra.mxu0 %v2369
  %2511 = vmatprep.subr.mxu0 0.0
  %2512 = vmatpush1.xpose.msra.mxu0 %v2372
  %2513 = vmatprep.subr.mxu0 0.0
  %2514 = vmatpush1.xpose.msra.mxu0 %v2375
  %2515 = vmatprep.subr.mxu0 0.0
  %2516 = vmatpush1.xpose.msra.mxu0 %v2378
  %2517 = vmatprep.subr.mxu0 0.0
  %2518 = vmatpush1.xpose.msra.mxu0 %v2381
  %2519 = vmatprep.subr.mxu0 0.0
  %2520 = vmatpush1.xpose.msra.mxu0 %v2384
  %2521 = vmatprep.mubr.f32.mxu0 0.0
  %2522 = vmatmul.mubr.f32.gmra.mrb[0].mxu0 %v2192
  %v2523 = vpop.f32.mrb[0].mxu0
  %v2524 = vadd.f32 %v2189, %v2523
  %v2525 = vpop.f32.mrb[0].mxu0
  %v2526 = vadd.f32 %v2189, %v2525
  %2527 = vdwg.mxu0
  %v2528 = vlaneseq
  %v2529 = vshrl.u32 %v2528, 7
  %vm2530 = vcmp.lt.s32.totalorder %v2529, 2
  %v2531 = vtanh.pop %v2453
  %v2532 = vtanh.pop %v2455
  %v2533 = vtanh.pop %v2524
  %v2534 = vtanh.pop %v2526
  %v2535 = vsel %vm2530, %v2531, %v2453
  %v2536 = vsel %vm2530, %v2532, %v2455
  %v2537 = vsel %vm2530, %v2533, %v2524
  %v2538 = vsel %vm2530, %v2534, %v2526
  %2539 = vst [vmem:[%s9] sm:$0xff] %v2535
  %2540 = vst [vmem:[%s9 + $0x8] sm:$0xff] %v2536
  %2541 = vst [vmem:[%s9 + $0x10] sm:$0xff] %v2537
  %2542 = vst [vmem:[%s9 + $0x18] sm:$0xff] %v2538
  // Predicated region
  $region38: #{ddpg_forward.1} parent=0 // pred_check
    _
  $region39: #{ddpg_forward.1} parent=0 // pred_check_branch
    %2544 = sbr.rel (0) target = $region41
  $region40: #{ddpg_forward.1} parent=0 // pred_region
    _
  $region41: #{ddpg_forward.1} parent=0 // pred_fallthru
    _
  // Predicated region
  $region42: #{ddpg_forward.1} parent=0 // pred_check
    _
  $region43: #{ddpg_forward.1} parent=0 // pred_check_branch
    %2546 = sbr.rel (0) target = $region45
  $region44: #{ddpg_forward.1} parent=0 // pred_region
    _
  $region45: #{ddpg_forward.1} parent=0 // pred_fallthru
    _

</llo_original>
